<compile_context>
chip_gen: v7x
topology: tpu7x:2x2x1
jax: 0.10.0
libtpu: 0.0.40
codegen_flags: <defaults>
</compile_context>

<pallas_src>
import math

import jax
import jax.numpy as jnp
from jax.experimental import pallas as pl
from jax.experimental.pallas import tpu as pltpu


def fixed_embedding_kernel(idx_ref, w_ref, o_ref):
    """One grid step: gather tile_r * P embedding rows as a lane-dense slab.

    idx_ref: (tile_r, P)          int32   -- P logical indices per packed row
    w_ref:   (c_in, d_model)      float32 -- embedding table, VMEM-resident
    o_ref:   (tile_r, P*d_model)  float32 -- packed output block
    """
    tile_r, p = idx_ref.shape
    c_in, d_model = w_ref.shape

    w = w_ref[...]                                            # load table once
    cols = jax.lax.broadcasted_iota(jnp.int32, (tile_r, c_in), 1)

    # P small one-hot gathers (work linear in P); p <= 8 -> unrolled at trace
    # time.  Garbage indices in a clipped ragged tail simply yield zero /
    # arbitrary finite rows that are never written back to HBM.
    for j in range(p):
        one_hot = (idx_ref[:, j:j + 1] == cols).astype(jnp.float32)
        piece = jnp.dot(one_hot, w,
                        preferred_element_type=jnp.float32,
                        precision=jax.lax.Precision.HIGHEST)  # exact f32 gather
        o_ref[:, j * d_model:(j + 1) * d_model] = piece


def make_fixed_embedding_table(c_in: int, d_model: int) -> jnp.ndarray:
    """Deterministic sinusoidal table, matching the PyTorch __init__ (f32)."""
    position = jnp.arange(c_in, dtype=jnp.float32)[:, None]                 # (c_in, 1)
    div_term = jnp.exp(jnp.arange(0, d_model, 2, dtype=jnp.float32)
                       * -(math.log(10000.0) / d_model))                    # (ceil(d/2),)
    sin = jnp.sin(position * div_term)
    cos = jnp.cos(position * div_term)
    w = jnp.zeros((c_in, d_model), dtype=jnp.float32)
    w = w.at[:, 0::2].set(sin[:, : (d_model + 1) // 2])
    w = w.at[:, 1::2].set(cos[:, : d_model // 2])
    return w


def fixed_embedding(x: jnp.ndarray, w: jnp.ndarray, *, block_rows: int | None = None):
    """x: (B, L) integer indices -> (B, L, d_model) float32."""
    B, L = x.shape
    c_in, d_model = w.shape
    n = B * L

    # Pack P logical rows per physical output row so the output last dim is a
    # multiple of 128 (unmasked lane-dense stores). Cap P so one-hot work per
    # stored byte stays negligible; degenerate tiny d_model falls back to P=1.
    pack = 128 // math.gcd(d_model, 128)
    if pack > 8:
        pack = 1  # TODO(synk): d_model < 16 keeps masked partial stores (toy case).
    pd_model = pack * d_model

    rows = -(-n // pack)                       # packed rows actually needed

    idx = x.reshape(n).astype(jnp.int32)
    if rows * pack != n:
        # Pad with index 0 (valid row); at most pack-1 elements, sliced below.
        idx = jnp.pad(idx, (0, rows * pack - n))
    idx_packed = idx.reshape(rows, pack)

    # ---- bytes-based tile selection (no padding of rows; ragged grid) ----
    if block_rows is None:
        TARGET_BLOCK_BYTES = 4 * 1024 * 1024               # ~2-4 MiB output block
        row_bytes = 4 * (pd_model + pack * c_in + pack)    # out + one-hot temps + idx
        tile_r = max(8, TARGET_BLOCK_BYTES // row_bytes)
        if rows >= 16:
            tile_r = min(tile_r, -(-rows // 2))            # >=2 grid steps (v7x megacore)
    else:
        tile_r = block_rows
    if rows <= 8:
        tile_r = rows                                      # single block == full dim
    else:
        tile_r = max(8, (min(tile_r, rows) // 8) * 8)      # multiple of 8 sublanes

    grid = (pl.cdiv(rows, tile_r),)                        # ragged last block is clipped

    cost = pl.CostEstimate(
        flops=2 * rows * pack * c_in * d_model,
        transcendentals=0,
        bytes_accessed=(rows * pack * 4            # indices in
                        + rows * pd_model * 4      # embeddings out
                        + c_in * d_model * 4),     # resident table
    )

    out_packed = pl.pallas_call(
        fixed_embedding_kernel,
        out_shape=jax.ShapeDtypeStruct((rows, pd_model), jnp.float32),
        grid=grid,
        in_specs=[
            pl.BlockSpec((tile_r, pack), lambda i: (i, 0)),      # index tile streams in
            pl.BlockSpec((c_in, d_model), lambda i: (0, 0)),     # table, resident
        ],
        out_specs=pl.BlockSpec((tile_r, pd_model), lambda i: (i, 0)),
        compiler_params=pltpu.CompilerParams(
            dimension_semantics=("parallel",),        # v7x: shard rows over 2 TCs
            vmem_limit_bytes=32 * 1024 * 1024,        # safe on v5e/v6e/v7x
        ),
        cost_estimate=cost,
    )(idx_packed, w)

    # Un-pack: row r holds logical rows r*pack .. r*pack+pack-1 (row-major, so
    # the reshape is a free bitcast; the slice only fires when B*L % pack != 0
    # and drops at most pack-1 rows).
    out = out_packed.reshape(rows * pack, d_model)
    if rows * pack != n:
        out = out[:n]
    return out.reshape(B, L, d_model)


if __name__ == "__main__":
    key = jax.random.PRNGKey(0)
    k1, k2, k3 = jax.random.split(key, 3)

    # Config 1: small temporal-embedding style, packed path (pack=4).
    c_in, d_model = 16, 32
    B, L = 2, 8
    x = jax.random.randint(k1, (B, L), minval=0, maxval=c_in, dtype=jnp.int32)
    w = make_fixed_embedding_table(c_in, d_model)
    out = jax.block_until_ready(fixed_embedding(x, w))
    ref = w[x]
    assert out.shape == (B, L, d_model)
    assert out.dtype == jnp.float32
    assert jnp.allclose(out, ref, atol=1e-6, rtol=1e-6)

    # Config 2: d_model multiple of 128 (pack=1), multi-step ragged grid.
    c_in2, d_model2 = 24, 128
    B2, L2 = 2, 48
    x2 = jax.random.randint(k2, (B2, L2), minval=0, maxval=c_in2, dtype=jnp.int32)
    w2 = make_fixed_embedding_table(c_in2, d_model2)
    out2 = jax.block_until_ready(fixed_embedding(x2, w2, block_rows=40))
    assert jnp.allclose(out2, w2[x2], atol=1e-6, rtol=1e-6)

    # Config 3: n not divisible by pack (exercises index padding + tail slice).
    c_in3, d_model3 = 7, 64
    B3, L3 = 1, 5
    x3 = jax.random.randint(k3, (B3, L3), minval=0, maxval=c_in3, dtype=jnp.int32)
    w3 = make_fixed_embedding_table(c_in3, d_model3)
    out3 = jax.block_until_ready(fixed_embedding(x3, w3))
    assert jnp.allclose(out3, w3[x3], atol=1e-6, rtol=1e-6)

    print("KERNEL_OK")
</pallas_src>

<mosaic_0001>
module attributes {stable_mosaic.version = 11 : i64} {
  func.func @fixed_embedding_kernel(%arg0: i32, %arg1: memref<4x4xi32, #tpu.memory_space<vmem>>, %arg2: memref<16x32xf32, #tpu.memory_space<vmem>>, %arg3: memref<4x128xf32, #tpu.memory_space<vmem>>) attributes {dimension_semantics = [#tpu.dimension_semantics<parallel>], iteration_bounds = array<i64: 1>, scalar_prefetch = 0 : i64, scratch_operands = 0 : i64, tpu.core_type = #tpu.core_type<tc>, window_params = [{transform_indices = @transform_0, window_bounds = array<i64: 4, 4>}, {pipeline_mode = #tpu.pipeline_mode<synchronous>, transform_indices = @transform_1, window_bounds = array<i64: 16, 32>}, {transform_indices = @transform_2, window_bounds = array<i64: 4, 128>}]} {
    %c0 = arith.constant 0 : index
    %c0_0 = arith.constant 0 : index
    %0 = vector.load %arg2[%c0, %c0_0] : memref<16x32xf32, #tpu.memory_space<vmem>>, vector<16x32xf32>
    %1 = tpu.iota {dimensions = array<i32: 1>} : vector<4x16xi32>
    %c0_1 = arith.constant 0 : index
    %c0_2 = arith.constant 0 : index
    %2 = vector.load %arg1[%c0_1, %c0_2] : memref<4x4xi32, #tpu.memory_space<vmem>>, vector<4x1xi32>
    %3 = vector.broadcast %2 : vector<4x1xi32> to vector<4x16xi32>
    %4 = arith.cmpi eq, %3, %1 : vector<4x16xi32>
    %5 = arith.extui %4 : vector<4x16xi1> to vector<4x16xi32>
    %6 = arith.sitofp %5 : vector<4x16xi32> to vector<4x16xf32>
    %cst = arith.constant dense<0.000000e+00> : vector<4x32xf32>
    %7 = tpu.matmul %6, %0, %cst {dimension_numbers = #tpu.dot_dimension_numbers<[1], [0], [0], [1], [0, 0, 1, 1], [], []>, precision = #tpu.contract_precision<fp32>} : vector<4x16xf32>, vector<16x32xf32>, vector<4x32xf32> -> vector<4x32xf32>
    %c0_3 = arith.constant 0 : index
    %c0_4 = arith.constant 0 : index
    %8 = vector.load %arg3[%c0_3, %c0_4] : memref<4x128xf32, #tpu.memory_space<vmem>>, vector<4x32xf32>
    tpu.vector_store %arg3[%c0_3, %c0_4], %7 {strides = array<i32>} : memref<4x128xf32, #tpu.memory_space<vmem>>, vector<4x32xf32>,
    %c0_5 = arith.constant 0 : index
    %c1 = arith.constant 1 : index
    %9 = vector.load %arg1[%c0_5, %c1] : memref<4x4xi32, #tpu.memory_space<vmem>>, vector<4x1xi32>
    %10 = vector.broadcast %9 : vector<4x1xi32> to vector<4x16xi32>
    %11 = arith.cmpi eq, %10, %1 : vector<4x16xi32>
    %12 = arith.extui %11 : vector<4x16xi1> to vector<4x16xi32>
    %13 = arith.sitofp %12 : vector<4x16xi32> to vector<4x16xf32>
    %cst_6 = arith.constant dense<0.000000e+00> : vector<4x32xf32>
    %14 = tpu.matmul %13, %0, %cst_6 {dimension_numbers = #tpu.dot_dimension_numbers<[1], [0], [0], [1], [0, 0, 1, 1], [], []>, precision = #tpu.contract_precision<fp32>} : vector<4x16xf32>, vector<16x32xf32>, vector<4x32xf32> -> vector<4x32xf32>
    %c0_7 = arith.constant 0 : index
    %c32 = arith.constant 32 : index
    %15 = vector.load %arg3[%c0_7, %c32] : memref<4x128xf32, #tpu.memory_space<vmem>>, vector<4x32xf32>
    tpu.vector_store %arg3[%c0_7, %c32], %14 {strides = array<i32>} : memref<4x128xf32, #tpu.memory_space<vmem>>, vector<4x32xf32>,
    %c0_8 = arith.constant 0 : index
    %c2 = arith.constant 2 : index
    %16 = vector.load %arg1[%c0_8, %c2] : memref<4x4xi32, #tpu.memory_space<vmem>>, vector<4x1xi32>
    %17 = vector.broadcast %16 : vector<4x1xi32> to vector<4x16xi32>
    %18 = arith.cmpi eq, %17, %1 : vector<4x16xi32>
    %19 = arith.extui %18 : vector<4x16xi1> to vector<4x16xi32>
    %20 = arith.sitofp %19 : vector<4x16xi32> to vector<4x16xf32>
    %cst_9 = arith.constant dense<0.000000e+00> : vector<4x32xf32>
    %21 = tpu.matmul %20, %0, %cst_9 {dimension_numbers = #tpu.dot_dimension_numbers<[1], [0], [0], [1], [0, 0, 1, 1], [], []>, precision = #tpu.contract_precision<fp32>} : vector<4x16xf32>, vector<16x32xf32>, vector<4x32xf32> -> vector<4x32xf32>
    %c0_10 = arith.constant 0 : index
    %c64 = arith.constant 64 : index
    %22 = vector.load %arg3[%c0_10, %c64] : memref<4x128xf32, #tpu.memory_space<vmem>>, vector<4x32xf32>
    tpu.vector_store %arg3[%c0_10, %c64], %21 {strides = array<i32>} : memref<4x128xf32, #tpu.memory_space<vmem>>, vector<4x32xf32>,
    %c0_11 = arith.constant 0 : index
    %c3 = arith.constant 3 : index
    %23 = vector.load %arg1[%c0_11, %c3] : memref<4x4xi32, #tpu.memory_space<vmem>>, vector<4x1xi32>
    %24 = vector.broadcast %23 : vector<4x1xi32> to vector<4x16xi32>
    %25 = arith.cmpi eq, %24, %1 : vector<4x16xi32>
    %26 = arith.extui %25 : vector<4x16xi1> to vector<4x16xi32>
    %27 = arith.sitofp %26 : vector<4x16xi32> to vector<4x16xf32>
    %cst_12 = arith.constant dense<0.000000e+00> : vector<4x32xf32>
    %28 = tpu.matmul %27, %0, %cst_12 {dimension_numbers = #tpu.dot_dimension_numbers<[1], [0], [0], [1], [0, 0, 1, 1], [], []>, precision = #tpu.contract_precision<fp32>} : vector<4x16xf32>, vector<16x32xf32>, vector<4x32xf32> -> vector<4x32xf32>
    %c0_13 = arith.constant 0 : index
    %c96 = arith.constant 96 : index
    %29 = vector.load %arg3[%c0_13, %c96] : memref<4x128xf32, #tpu.memory_space<vmem>>, vector<4x32xf32>
    tpu.vector_store %arg3[%c0_13, %c96], %28 {strides = array<i32>} : memref<4x128xf32, #tpu.memory_space<vmem>>, vector<4x32xf32>,
    return
  }
  func.func @transform_0(%arg0: i32) -> (i32, i32) {
    %c0_i32 = arith.constant 0 : i32
    %c0_i32_0 = arith.constant 0 : i32
    return %arg0, %c0_i32 : i32, i32
  }
  func.func @transform_1(%arg0: i32) -> (i32, i32) {
    %c0_i32 = arith.constant 0 : i32
    %c0_i32_0 = arith.constant 0 : i32
    %c0_i32_1 = arith.constant 0 : i32
    return %c0_i32, %c0_i32_0 : i32, i32
  }
  func.func @transform_2(%arg0: i32) -> (i32, i32) {
    %c0_i32 = arith.constant 0 : i32
    %c0_i32_0 = arith.constant 0 : i32
    return %arg0, %c0_i32 : i32, i32
  }
}

</mosaic_0001>

<llo_original>
// kernel: tpu_custom_call.1
$region0: #{tpu_custom_call.1}
  #allocation0 [shape = 'u32[]', space=smem, size = 0x4, offset = 0x4, fixed_abs, tag = 'smem constant byte address 0x4 - core index']
  #allocation1 [shape = 'u32[144,128]{1,0:T(1,128)}', space=vmem, size = 0x12000, scoped, tag = 'internal scratch']
  %s0 = inlined_call_operand.hbm [shape: s32[4,4], index: 0, kind: input, shape index: {}]
  %s1 = inlined_call_operand.hbm [shape: f32[16,32], index: 1, kind: input, shape index: {}]
  %s2 = inlined_call_operand.hbm [shape: f32[4,128], index: 2, kind: output, shape index: {}]
  %s3 = sld [smem:[#allocation0]]
  $region26: #{tpu_custom_call.1} parent=0
    _
  %s5 = ssub.s32 1, %s3
  %s6 = scalar_select 0, %s5, %s3
  $region1: #{tpu_custom_call.1} parent=0
    #allocation2 [shape = 'u8[2048]{0}', space=vmem, size = 0x800, scoped, tag = 'input window, operand 0, single buffered']
    #allocation3 [shape = 's32[1]{0}', space=sflag, size = 0x4, scoped, tag = 'scoped memory for tpu_custom_call.1']
    #allocation4 [shape = 's32[1]{0}', space=sflag, size = 0x4, scoped, tag = 'scoped memory for tpu_custom_call.1']
    #allocation5 [shape = 'u8[8192]{0}', space=vmem, size = 0x2000, scoped, tag = 'input window, operand 1, single buffered']
    #allocation6 [shape = 's32[1]{0}', space=sflag, size = 0x4, scoped, tag = 'scoped memory for tpu_custom_call.1']
    #allocation7 [shape = 'u8[2048]{0}', space=vmem, size = 0x800, scoped, tag = 'output window, operand 0, single buffered']
    %7 = vsyncpa [#allocation3], 0
    %8 = vsyncpa [#allocation6], 0
    %9 = vsyncpa [#allocation4], 0
    // Predicated region
    $region2: #{tpu_custom_call.1} parent=1 // pred_check
      _
    $region3: #{tpu_custom_call.1} parent=1 // pred_check_branch
      %11 = sbr.rel (0) target = $region5
    $region4: #{tpu_custom_call.1} parent=1 // pred_region
      %s13 = ssub.s32 64, 64
      %14 = vsyncadd [#allocation3], %s13
      %s16 = sshll.u32 [#allocation2], 4
      %s17 = int_to_ptr.vmem [resolvable:$true] %s16
      %19 = dma.hbm_to_vmem [thread:$0]  %s0, 64, %s17, [#allocation3]
    $region5: #{tpu_custom_call.1} parent=1 // pred_fallthru
      _
    // Predicated region
    $region6: #{tpu_custom_call.1} parent=1 // pred_check
      _
    $region7: #{tpu_custom_call.1} parent=1 // pred_check_branch
      %21 = sbr.rel (0) target = $region9
    $region8: #{tpu_custom_call.1} parent=1 // pred_region
      %s23 = ssub.s32 256, 256
      %24 = vsyncadd [#allocation6], %s23
      %s25 = sshll.u32 [#allocation5], 4
      %s26 = int_to_ptr.vmem [resolvable:$true] %s25
      %31 = dma.hbm_to_vmem [thread:$0]  %s1, 256, %s26, [#allocation6], 128, 128, 8
    $region9: #{tpu_custom_call.1} parent=1 // pred_fallthru
      _
    // Predicated region
    $region10: #{tpu_custom_call.1} parent=1 // pred_check
      _
    $region11: #{tpu_custom_call.1} parent=1 // pred_check_branch
      %33 = sbr.rel (0) target = $region13
    $region12: #{tpu_custom_call.1} parent=1 // pred_region
      %34 = dma.done [#allocation3], 64
    $region13: #{tpu_custom_call.1} parent=1 // pred_fallthru
      _
    // Predicated region
    $region14: #{tpu_custom_call.1} parent=1 // pred_check
      _
    $region15: #{tpu_custom_call.1} parent=1 // pred_check_branch
      %36 = sbr.rel (0) target = $region17
    $region16: #{tpu_custom_call.1} parent=1 // pred_region
      %37 = dma.done [#allocation6], 256
    $region17: #{tpu_custom_call.1} parent=1 // pred_fallthru
      _
    %v38 = vld [vmem:[#allocation5] sm:$0xff]
    %v39 = vld [vmem:[#allocation5 + $0x8] sm:$0xff]
    %v40 = vlaneseq
    %v41 = vand.u32 %v40, 127
    %v42 = vld [vmem:[#allocation2] sm:$0xf]
    %43 = vset.pattern.permute.xlu0 0
    %44 = vperm.xlu0 %43, %v42
    %v45 = vpop.permute.xlu0 %44
    %vm46 = vcmp.eq.s32.totalorder %v45, %v41
    %v47 = vsel %vm46, 1, 0
    %v48 = vcvt.s32.f32 %v47
    %vm49 = vcmask 130048
    %v51 = vsel %vm49, %v48, 0
    %53 = vmatprep.subr.mxu0 0.0
    %v54 = vand.u32 %v38, 4294901760
    %55 = vmatpush1.msra.mxu0 %v54
    %56 = vmatprep.subr.mxu0 0.0
    %v57 = vand.u32 %v39, 4294901760
    %58 = vmatpush1.msra.mxu0 %v57
    %59 = vmatprep.subr.mxu0 0.0
    %60 = vmatpush1.msra.mxu0 0.0
    %61 = vmatprep.subr.mxu0 0.0
    %62 = vmatpush1.msra.mxu0 0.0
    %63 = vmatprep.subr.mxu0 0.0
    %64 = vmatpush1.msra.mxu0 0.0
    %65 = vmatprep.subr.mxu0 0.0
    %66 = vmatpush1.msra.mxu0 0.0
    %67 = vmatprep.subr.mxu0 0.0
    %68 = vmatpush1.msra.mxu0 0.0
    %69 = vmatprep.subr.mxu0 0.0
    %70 = vmatpush1.msra.mxu0 0.0
    %71 = vmatprep.subr.mxu0 0.0
    %72 = vmatpush1.msra.mxu0 0.0
    %73 = vmatprep.subr.mxu0 0.0
    %74 = vmatpush1.msra.mxu0 0.0
    %75 = vmatprep.subr.mxu0 0.0
    %76 = vmatpush1.msra.mxu0 0.0
    %77 = vmatprep.subr.mxu0 0.0
    %78 = vmatpush1.msra.mxu0 0.0
    %79 = vmatprep.subr.mxu0 0.0
    %80 = vmatpush1.msra.mxu0 0.0
    %81 = vmatprep.subr.mxu0 0.0
    %82 = vmatpush1.msra.mxu0 0.0
    %83 = vmatprep.subr.mxu0 0.0
    %84 = vmatpush1.msra.mxu0 0.0
    %85 = vmatprep.subr.mxu0 0.0
    %86 = vmatpush1.msra.mxu0 0.0
    %87 = vmatprep.subr.mxu0 0.0
    %88 = vmatpush1.msra.mxu0 0.0
    %89 = vmatprep.subr.mxu0 0.0
    %90 = vmatpush1.msra.mxu0 0.0
    %91 = vmatprep.subr.mxu0 0.0
    %92 = vmatpush1.msra.mxu0 0.0
    %93 = vmatprep.subr.mxu0 0.0
    %94 = vmatpush1.msra.mxu0 0.0
    %95 = vmatprep.subr.mxu0 0.0
    %96 = vmatpush1.msra.mxu0 0.0
    %97 = vmatprep.subr.mxu0 0.0
    %98 = vmatpush1.msra.mxu0 0.0
    %99 = vmatprep.subr.mxu0 0.0
    %100 = vmatpush1.msra.mxu0 0.0
    %101 = vmatprep.subr.mxu0 0.0
    %102 = vmatpush1.msra.mxu0 0.0
    %103 = vmatprep.subr.mxu0 0.0
    %104 = vmatpush1.msra.mxu0 0.0
    %105 = vmatprep.subr.mxu0 0.0
    %106 = vmatpush1.msra.mxu0 0.0
    %107 = vmatprep.subr.mxu0 0.0
    %108 = vmatpush1.msra.mxu0 0.0
    %109 = vmatprep.subr.mxu0 0.0
    %110 = vmatpush1.msra.mxu0 0.0
    %111 = vmatprep.subr.mxu0 0.0
    %112 = vmatpush1.msra.mxu0 0.0
    %113 = vmatprep.subr.mxu0 0.0
    %114 = vmatpush1.msra.mxu0 0.0
    %115 = vmatprep.subr.mxu0 0.0
    %116 = vmatpush1.msra.mxu0 0.0
    %117 = vmatprep.subr.mxu0 0.0
    %118 = vmatpush1.msra.mxu0 0.0
    %119 = vmatprep.mubr.f32.mxu0 0.0
    %v120 = vand.u32 %v51, 4294901760
    %v121 = vsub.f32 %v51, %v120
    %v122 = vand.u32 %v121, 4294901760
    %v123 = vsub.f32 %v121, %v122
    %v124 = vand.u32 %v123, 4294901760
    %125 = vmatmul.mubr.f32.gmra.mrb[0].mxu0 %v124
    %v126 = vpop.f32.mrb[0].mxu0
    %v127 = vadd.f32 0.0, %v126
    %v128 = vpop.f32.mrb[0].mxu0
    %129 = vdwg.mxu0
    %130 = vmatprep.subr.mxu0 0.0
    %v131 = vand.u32 %v38, 4294901760
    %v132 = vsub.f32 %v38, %v131
    %v133 = vand.u32 %v132, 4294901760
    %v134 = vsub.f32 %v132, %v133
    %v135 = vand.u32 %v134, 4294901760
    %136 = vmatpush1.msra.mxu0 %v135
    %137 = vmatprep.subr.mxu0 0.0
    %v138 = vand.u32 %v39, 4294901760
    %v139 = vsub.f32 %v39, %v138
    %v140 = vand.u32 %v139, 4294901760
    %v141 = vsub.f32 %v139, %v140
    %v142 = vand.u32 %v141, 4294901760
    %143 = vmatpush1.msra.mxu0 %v142
    %144 = vmatprep.subr.mxu0 0.0
    %145 = vmatpush1.msra.mxu0 0.0
    %146 = vmatprep.subr.mxu0 0.0
    %147 = vmatpush1.msra.mxu0 0.0
    %148 = vmatprep.subr.mxu0 0.0
    %149 = vmatpush1.msra.mxu0 0.0
    %150 = vmatprep.subr.mxu0 0.0
    %151 = vmatpush1.msra.mxu0 0.0
    %152 = vmatprep.subr.mxu0 0.0
    %153 = vmatpush1.msra.mxu0 0.0
    %154 = vmatprep.subr.mxu0 0.0
    %155 = vmatpush1.msra.mxu0 0.0
    %156 = vmatprep.subr.mxu0 0.0
    %157 = vmatpush1.msra.mxu0 0.0
    %158 = vmatprep.subr.mxu0 0.0
    %159 = vmatpush1.msra.mxu0 0.0
    %160 = vmatprep.subr.mxu0 0.0
    %161 = vmatpush1.msra.mxu0 0.0
    %162 = vmatprep.subr.mxu0 0.0
    %163 = vmatpush1.msra.mxu0 0.0
    %164 = vmatprep.subr.mxu0 0.0
    %165 = vmatpush1.msra.mxu0 0.0
    %166 = vmatprep.subr.mxu0 0.0
    %167 = vmatpush1.msra.mxu0 0.0
    %168 = vmatprep.subr.mxu0 0.0
    %169 = vmatpush1.msra.mxu0 0.0
    %170 = vmatprep.subr.mxu0 0.0
    %171 = vmatpush1.msra.mxu0 0.0
    %172 = vmatprep.subr.mxu0 0.0
    %173 = vmatpush1.msra.mxu0 0.0
    %174 = vmatprep.subr.mxu0 0.0
    %175 = vmatpush1.msra.mxu0 0.0
    %176 = vmatprep.subr.mxu0 0.0
    %177 = vmatpush1.msra.mxu0 0.0
    %178 = vmatprep.subr.mxu0 0.0
    %179 = vmatpush1.msra.mxu0 0.0
    %180 = vmatprep.subr.mxu0 0.0
    %181 = vmatpush1.msra.mxu0 0.0
    %182 = vmatprep.subr.mxu0 0.0
    %183 = vmatpush1.msra.mxu0 0.0
    %184 = vmatprep.subr.mxu0 0.0
    %185 = vmatpush1.msra.mxu0 0.0
    %186 = vmatprep.subr.mxu0 0.0
    %187 = vmatpush1.msra.mxu0 0.0
    %188 = vmatprep.subr.mxu0 0.0
    %189 = vmatpush1.msra.mxu0 0.0
    %190 = vmatprep.subr.mxu0 0.0
    %191 = vmatpush1.msra.mxu0 0.0
    %192 = vmatprep.subr.mxu0 0.0
    %193 = vmatpush1.msra.mxu0 0.0
    %194 = vmatprep.subr.mxu0 0.0
    %195 = vmatpush1.msra.mxu0 0.0
    %196 = vmatprep.subr.mxu0 0.0
    %197 = vmatpush1.msra.mxu0 0.0
    %198 = vmatprep.subr.mxu0 0.0
    %199 = vmatpush1.msra.mxu0 0.0
    %200 = vmatprep.subr.mxu0 0.0
    %201 = vmatpush1.msra.mxu0 0.0
    %202 = vmatprep.subr.mxu0 0.0
    %203 = vmatpush1.msra.mxu0 0.0
    %204 = vmatprep.mubr.f32.mxu0 0.0
    %v205 = vand.u32 %v51, 4294901760
    %206 = vmatmul.mubr.f32.gmra.mrb[0].mxu0 %v205
    %v207 = vpop.f32.mrb[0].mxu0
    %v208 = vadd.f32 %v127, %v207
    %v209 = vpop.f32.mrb[0].mxu0
    %210 = vdwg.mxu0
    %211 = vmatprep.subr.mxu0 0.0
    %v212 = vand.u32 %v38, 4294901760
    %v213 = vsub.f32 %v38, %v212
    %214 = vmatpush1.msra.mxu0 %v213
    %215 = vmatprep.subr.mxu0 0.0
    %v216 = vand.u32 %v39, 4294901760
    %v217 = vsub.f32 %v39, %v216
    %218 = vmatpush1.msra.mxu0 %v217
    %219 = vmatprep.subr.mxu0 0.0
    %220 = vmatpush1.msra.mxu0 0.0
    %221 = vmatprep.subr.mxu0 0.0
    %222 = vmatpush1.msra.mxu0 0.0
    %223 = vmatprep.subr.mxu0 0.0
    %224 = vmatpush1.msra.mxu0 0.0
    %225 = vmatprep.subr.mxu0 0.0
    %226 = vmatpush1.msra.mxu0 0.0
    %227 = vmatprep.subr.mxu0 0.0
    %228 = vmatpush1.msra.mxu0 0.0
    %229 = vmatprep.subr.mxu0 0.0
    %230 = vmatpush1.msra.mxu0 0.0
    %231 = vmatprep.subr.mxu0 0.0
    %232 = vmatpush1.msra.mxu0 0.0
    %233 = vmatprep.subr.mxu0 0.0
    %234 = vmatpush1.msra.mxu0 0.0
    %235 = vmatprep.subr.mxu0 0.0
    %236 = vmatpush1.msra.mxu0 0.0
    %237 = vmatprep.subr.mxu0 0.0
    %238 = vmatpush1.msra.mxu0 0.0
    %239 = vmatprep.subr.mxu0 0.0
    %240 = vmatpush1.msra.mxu0 0.0
    %241 = vmatprep.subr.mxu0 0.0
    %242 = vmatpush1.msra.mxu0 0.0
    %243 = vmatprep.subr.mxu0 0.0
    %244 = vmatpush1.msra.mxu0 0.0
    %245 = vmatprep.subr.mxu0 0.0
    %246 = vmatpush1.msra.mxu0 0.0
    %247 = vmatprep.subr.mxu0 0.0
    %248 = vmatpush1.msra.mxu0 0.0
    %249 = vmatprep.subr.mxu0 0.0
    %250 = vmatpush1.msra.mxu0 0.0
    %251 = vmatprep.subr.mxu0 0.0
    %252 = vmatpush1.msra.mxu0 0.0
    %253 = vmatprep.subr.mxu0 0.0
    %254 = vmatpush1.msra.mxu0 0.0
    %255 = vmatprep.subr.mxu0 0.0
    %256 = vmatpush1.msra.mxu0 0.0
    %257 = vmatprep.subr.mxu0 0.0
    %258 = vmatpush1.msra.mxu0 0.0
    %259 = vmatprep.subr.mxu0 0.0
    %260 = vmatpush1.msra.mxu0 0.0
    %261 = vmatprep.subr.mxu0 0.0
    %262 = vmatpush1.msra.mxu0 0.0
    %263 = vmatprep.subr.mxu0 0.0
    %264 = vmatpush1.msra.mxu0 0.0
    %265 = vmatprep.subr.mxu0 0.0
    %266 = vmatpush1.msra.mxu0 0.0
    %267 = vmatprep.subr.mxu0 0.0
    %268 = vmatpush1.msra.mxu0 0.0
    %269 = vmatprep.subr.mxu0 0.0
    %270 = vmatpush1.msra.mxu0 0.0
    %271 = vmatprep.subr.mxu0 0.0
    %272 = vmatpush1.msra.mxu0 0.0
    %273 = vmatprep.subr.mxu0 0.0
    %274 = vmatpush1.msra.mxu0 0.0
    %275 = vmatprep.subr.mxu0 0.0
    %276 = vmatpush1.msra.mxu0 0.0
    %277 = vmatprep.subr.mxu0 0.0
    %278 = vmatpush1.msra.mxu0 0.0
    %279 = vmatprep.mubr.f32.mxu0 0.0
    %v280 = vand.u32 %v51, 4294901760
    %v281 = vsub.f32 %v51, %v280
    %282 = vmatmul.mubr.f32.gmra.mrb[0].mxu0 %v281
    %v283 = vpop.f32.mrb[0].mxu0
    %v284 = vadd.f32 %v208, %v283
    %v285 = vpop.f32.mrb[0].mxu0
    %286 = vdwg.mxu0
    %287 = vmatprep.subr.mxu0 0.0
    %v288 = vand.u32 %v38, 4294901760
    %289 = vmatpush1.msra.mxu0 %v288
    %290 = vmatprep.subr.mxu0 0.0
    %v291 = vand.u32 %v39, 4294901760
    %292 = vmatpush1.msra.mxu0 %v291
    %293 = vmatprep.subr.mxu0 0.0
    %294 = vmatpush1.msra.mxu0 0.0
    %295 = vmatprep.subr.mxu0 0.0
    %296 = vmatpush1.msra.mxu0 0.0
    %297 = vmatprep.subr.mxu0 0.0
    %298 = vmatpush1.msra.mxu0 0.0
    %299 = vmatprep.subr.mxu0 0.0
    %300 = vmatpush1.msra.mxu0 0.0
    %301 = vmatprep.subr.mxu0 0.0
    %302 = vmatpush1.msra.mxu0 0.0
    %303 = vmatprep.subr.mxu0 0.0
    %304 = vmatpush1.msra.mxu0 0.0
    %305 = vmatprep.subr.mxu0 0.0
    %306 = vmatpush1.msra.mxu0 0.0
    %307 = vmatprep.subr.mxu0 0.0
    %308 = vmatpush1.msra.mxu0 0.0
    %309 = vmatprep.subr.mxu0 0.0
    %310 = vmatpush1.msra.mxu0 0.0
    %311 = vmatprep.subr.mxu0 0.0
    %312 = vmatpush1.msra.mxu0 0.0
    %313 = vmatprep.subr.mxu0 0.0
    %314 = vmatpush1.msra.mxu0 0.0
    %315 = vmatprep.subr.mxu0 0.0
    %316 = vmatpush1.msra.mxu0 0.0
    %317 = vmatprep.subr.mxu0 0.0
    %318 = vmatpush1.msra.mxu0 0.0
    %319 = vmatprep.subr.mxu0 0.0
    %320 = vmatpush1.msra.mxu0 0.0
    %321 = vmatprep.subr.mxu0 0.0
    %322 = vmatpush1.msra.mxu0 0.0
    %323 = vmatprep.subr.mxu0 0.0
    %324 = vmatpush1.msra.mxu0 0.0
    %325 = vmatprep.subr.mxu0 0.0
    %326 = vmatpush1.msra.mxu0 0.0
    %327 = vmatprep.subr.mxu0 0.0
    %328 = vmatpush1.msra.mxu0 0.0
    %329 = vmatprep.subr.mxu0 0.0
    %330 = vmatpush1.msra.mxu0 0.0
    %331 = vmatprep.subr.mxu0 0.0
    %332 = vmatpush1.msra.mxu0 0.0
    %333 = vmatprep.subr.mxu0 0.0
    %334 = vmatpush1.msra.mxu0 0.0
    %335 = vmatprep.subr.mxu0 0.0
    %336 = vmatpush1.msra.mxu0 0.0
    %337 = vmatprep.subr.mxu0 0.0
    %338 = vmatpush1.msra.mxu0 0.0
    %339 = vmatprep.subr.mxu0 0.0
    %340 = vmatpush1.msra.mxu0 0.0
    %341 = vmatprep.subr.mxu0 0.0
    %342 = vmatpush1.msra.mxu0 0.0
    %343 = vmatprep.subr.mxu0 0.0
    %344 = vmatpush1.msra.mxu0 0.0
    %345 = vmatprep.subr.mxu0 0.0
    %346 = vmatpush1.msra.mxu0 0.0
    %347 = vmatprep.subr.mxu0 0.0
    %348 = vmatpush1.msra.mxu0 0.0
    %349 = vmatprep.subr.mxu0 0.0
    %350 = vmatpush1.msra.mxu0 0.0
    %351 = vmatprep.subr.mxu0 0.0
    %352 = vmatpush1.msra.mxu0 0.0
    %353 = vmatprep.mubr.f32.mxu0 0.0
    %v354 = vand.u32 %v51, 4294901760
    %v355 = vsub.f32 %v51, %v354
    %v356 = vand.u32 %v355, 4294901760
    %357 = vmatmul.mubr.f32.gmra.mrb[0].mxu0 %v356
    %v358 = vpop.f32.mrb[0].mxu0
    %v359 = vadd.f32 %v284, %v358
    %v360 = vpop.f32.mrb[0].mxu0
    %361 = vdwg.mxu0
    %362 = vmatprep.subr.mxu0 0.0
    %v363 = vand.u32 %v38, 4294901760
    %v364 = vsub.f32 %v38, %v363
    %v365 = vand.u32 %v364, 4294901760
    %366 = vmatpush1.msra.mxu0 %v365
    %367 = vmatprep.subr.mxu0 0.0
    %v368 = vand.u32 %v39, 4294901760
    %v369 = vsub.f32 %v39, %v368
    %v370 = vand.u32 %v369, 4294901760
    %371 = vmatpush1.msra.mxu0 %v370
    %372 = vmatprep.subr.mxu0 0.0
    %373 = vmatpush1.msra.mxu0 0.0
    %374 = vmatprep.subr.mxu0 0.0
    %375 = vmatpush1.msra.mxu0 0.0
    %376 = vmatprep.subr.mxu0 0.0
    %377 = vmatpush1.msra.mxu0 0.0
    %378 = vmatprep.subr.mxu0 0.0
    %379 = vmatpush1.msra.mxu0 0.0
    %380 = vmatprep.subr.mxu0 0.0
    %381 = vmatpush1.msra.mxu0 0.0
    %382 = vmatprep.subr.mxu0 0.0
    %383 = vmatpush1.msra.mxu0 0.0
    %384 = vmatprep.subr.mxu0 0.0
    %385 = vmatpush1.msra.mxu0 0.0
    %386 = vmatprep.subr.mxu0 0.0
    %387 = vmatpush1.msra.mxu0 0.0
    %388 = vmatprep.subr.mxu0 0.0
    %389 = vmatpush1.msra.mxu0 0.0
    %390 = vmatprep.subr.mxu0 0.0
    %391 = vmatpush1.msra.mxu0 0.0
    %392 = vmatprep.subr.mxu0 0.0
    %393 = vmatpush1.msra.mxu0 0.0
    %394 = vmatprep.subr.mxu0 0.0
    %395 = vmatpush1.msra.mxu0 0.0
    %396 = vmatprep.subr.mxu0 0.0
    %397 = vmatpush1.msra.mxu0 0.0
    %398 = vmatprep.subr.mxu0 0.0
    %399 = vmatpush1.msra.mxu0 0.0
    %400 = vmatprep.subr.mxu0 0.0
    %401 = vmatpush1.msra.mxu0 0.0
    %402 = vmatprep.subr.mxu0 0.0
    %403 = vmatpush1.msra.mxu0 0.0
    %404 = vmatprep.subr.mxu0 0.0
    %405 = vmatpush1.msra.mxu0 0.0
    %406 = vmatprep.subr.mxu0 0.0
    %407 = vmatpush1.msra.mxu0 0.0
    %408 = vmatprep.subr.mxu0 0.0
    %409 = vmatpush1.msra.mxu0 0.0
    %410 = vmatprep.subr.mxu0 0.0
    %411 = vmatpush1.msra.mxu0 0.0
    %412 = vmatprep.subr.mxu0 0.0
    %413 = vmatpush1.msra.mxu0 0.0
    %414 = vmatprep.subr.mxu0 0.0
    %415 = vmatpush1.msra.mxu0 0.0
    %416 = vmatprep.subr.mxu0 0.0
    %417 = vmatpush1.msra.mxu0 0.0
    %418 = vmatprep.subr.mxu0 0.0
    %419 = vmatpush1.msra.mxu0 0.0
    %420 = vmatprep.subr.mxu0 0.0
    %421 = vmatpush1.msra.mxu0 0.0
    %422 = vmatprep.subr.mxu0 0.0
    %423 = vmatpush1.msra.mxu0 0.0
    %424 = vmatprep.subr.mxu0 0.0
    %425 = vmatpush1.msra.mxu0 0.0
    %426 = vmatprep.subr.mxu0 0.0
    %427 = vmatpush1.msra.mxu0 0.0
    %428 = vmatprep.subr.mxu0 0.0
    %429 = vmatpush1.msra.mxu0 0.0
    %430 = vmatprep.subr.mxu0 0.0
    %431 = vmatpush1.msra.mxu0 0.0
    %432 = vmatprep.mubr.f32.mxu0 0.0
    %v433 = vand.u32 %v51, 4294901760
    %434 = vmatmul.mubr.f32.gmra.mrb[0].mxu0 %v433
    %v435 = vpop.f32.mrb[0].mxu0
    %v436 = vadd.f32 %v359, %v435
    %v437 = vpop.f32.mrb[0].mxu0
    %438 = vdwg.mxu0
    %439 = vmatprep.subr.mxu0 0.0
    %v440 = vand.u32 %v38, 4294901760
    %441 = vmatpush1.msra.mxu0 %v440
    %442 = vmatprep.subr.mxu0 0.0
    %v443 = vand.u32 %v39, 4294901760
    %444 = vmatpush1.msra.mxu0 %v443
    %445 = vmatprep.subr.mxu0 0.0
    %446 = vmatpush1.msra.mxu0 0.0
    %447 = vmatprep.subr.mxu0 0.0
    %448 = vmatpush1.msra.mxu0 0.0
    %449 = vmatprep.subr.mxu0 0.0
    %450 = vmatpush1.msra.mxu0 0.0
    %451 = vmatprep.subr.mxu0 0.0
    %452 = vmatpush1.msra.mxu0 0.0
    %453 = vmatprep.subr.mxu0 0.0
    %454 = vmatpush1.msra.mxu0 0.0
    %455 = vmatprep.subr.mxu0 0.0
    %456 = vmatpush1.msra.mxu0 0.0
    %457 = vmatprep.subr.mxu0 0.0
    %458 = vmatpush1.msra.mxu0 0.0
    %459 = vmatprep.subr.mxu0 0.0
    %460 = vmatpush1.msra.mxu0 0.0
    %461 = vmatprep.subr.mxu0 0.0
    %462 = vmatpush1.msra.mxu0 0.0
    %463 = vmatprep.subr.mxu0 0.0
    %464 = vmatpush1.msra.mxu0 0.0
    %465 = vmatprep.subr.mxu0 0.0
    %466 = vmatpush1.msra.mxu0 0.0
    %467 = vmatprep.subr.mxu0 0.0
    %468 = vmatpush1.msra.mxu0 0.0
    %469 = vmatprep.subr.mxu0 0.0
    %470 = vmatpush1.msra.mxu0 0.0
    %471 = vmatprep.subr.mxu0 0.0
    %472 = vmatpush1.msra.mxu0 0.0
    %473 = vmatprep.subr.mxu0 0.0
    %474 = vmatpush1.msra.mxu0 0.0
    %475 = vmatprep.subr.mxu0 0.0
    %476 = vmatpush1.msra.mxu0 0.0
    %477 = vmatprep.subr.mxu0 0.0
    %478 = vmatpush1.msra.mxu0 0.0
    %479 = vmatprep.subr.mxu0 0.0
    %480 = vmatpush1.msra.mxu0 0.0
    %481 = vmatprep.subr.mxu0 0.0
    %482 = vmatpush1.msra.mxu0 0.0
    %483 = vmatprep.subr.mxu0 0.0
    %484 = vmatpush1.msra.mxu0 0.0
    %485 = vmatprep.subr.mxu0 0.0
    %486 = vmatpush1.msra.mxu0 0.0
    %487 = vmatprep.subr.mxu0 0.0
    %488 = vmatpush1.msra.mxu0 0.0
    %489 = vmatprep.subr.mxu0 0.0
    %490 = vmatpush1.msra.mxu0 0.0
    %491 = vmatprep.subr.mxu0 0.0
    %492 = vmatpush1.msra.mxu0 0.0
    %493 = vmatprep.subr.mxu0 0.0
    %494 = vmatpush1.msra.mxu0 0.0
    %495 = vmatprep.subr.mxu0 0.0
    %496 = vmatpush1.msra.mxu0 0.0
    %497 = vmatprep.subr.mxu0 0.0
    %498 = vmatpush1.msra.mxu0 0.0
    %499 = vmatprep.subr.mxu0 0.0
    %500 = vmatpush1.msra.mxu0 0.0
    %501 = vmatprep.subr.mxu0 0.0
    %502 = vmatpush1.msra.mxu0 0.0
    %503 = vmatprep.subr.mxu0 0.0
    %504 = vmatpush1.msra.mxu0 0.0
    %505 = vmatprep.mubr.f32.mxu0 0.0
    %v506 = vand.u32 %v51, 4294901760
    %507 = vmatmul.mubr.f32.gmra.mrb[0].mxu0 %v506
    %v508 = vpop.f32.mrb[0].mxu0
    %v509 = vadd.f32 %v436, %v508
    %v510 = vpop.f32.mrb[0].mxu0
    %511 = vdwg.mxu0
    %vm512 = vcmask 257024
    %513 = vst.msk [vmem:[#allocation7] sm:$0xf] %vm512, %v509
    %v514 = vld [vmem:[#allocation2] sm:$0xf]
    %515 = vset.pattern.permute.xlu0 1
    %516 = vperm.xlu0 %515, %v514
    %v517 = vpop.permute.xlu0 %516
    %vm518 = vcmp.eq.s32.totalorder %v517, %v41
    %v519 = vsel %vm518, 1, 0
    %v520 = vcvt.s32.f32 %v519
    %v522 = vsel %vm49, %v520, 0
    %524 = vmatprep.subr.mxu0 0.0
    %v525 = vand.u32 %v38, 4294901760
    %526 = vmatpush1.msra.mxu0 %v525
    %527 = vmatprep.subr.mxu0 0.0
    %v528 = vand.u32 %v39, 4294901760
    %529 = vmatpush1.msra.mxu0 %v528
    %530 = vmatprep.subr.mxu0 0.0
    %531 = vmatpush1.msra.mxu0 0.0
    %532 = vmatprep.subr.mxu0 0.0
    %533 = vmatpush1.msra.mxu0 0.0
    %534 = vmatprep.subr.mxu0 0.0
    %535 = vmatpush1.msra.mxu0 0.0
    %536 = vmatprep.subr.mxu0 0.0
    %537 = vmatpush1.msra.mxu0 0.0
    %538 = vmatprep.subr.mxu0 0.0
    %539 = vmatpush1.msra.mxu0 0.0
    %540 = vmatprep.subr.mxu0 0.0
    %541 = vmatpush1.msra.mxu0 0.0
    %542 = vmatprep.subr.mxu0 0.0
    %543 = vmatpush1.msra.mxu0 0.0
    %544 = vmatprep.subr.mxu0 0.0
    %545 = vmatpush1.msra.mxu0 0.0
    %546 = vmatprep.subr.mxu0 0.0
    %547 = vmatpush1.msra.mxu0 0.0
    %548 = vmatprep.subr.mxu0 0.0
    %549 = vmatpush1.msra.mxu0 0.0
    %550 = vmatprep.subr.mxu0 0.0
    %551 = vmatpush1.msra.mxu0 0.0
    %552 = vmatprep.subr.mxu0 0.0
    %553 = vmatpush1.msra.mxu0 0.0
    %554 = vmatprep.subr.mxu0 0.0
    %555 = vmatpush1.msra.mxu0 0.0
    %556 = vmatprep.subr.mxu0 0.0
    %557 = vmatpush1.msra.mxu0 0.0
    %558 = vmatprep.subr.mxu0 0.0
    %559 = vmatpush1.msra.mxu0 0.0
    %560 = vmatprep.subr.mxu0 0.0
    %561 = vmatpush1.msra.mxu0 0.0
    %562 = vmatprep.subr.mxu0 0.0
    %563 = vmatpush1.msra.mxu0 0.0
    %564 = vmatprep.subr.mxu0 0.0
    %565 = vmatpush1.msra.mxu0 0.0
    %566 = vmatprep.subr.mxu0 0.0
    %567 = vmatpush1.msra.mxu0 0.0
    %568 = vmatprep.subr.mxu0 0.0
    %569 = vmatpush1.msra.mxu0 0.0
    %570 = vmatprep.subr.mxu0 0.0
    %571 = vmatpush1.msra.mxu0 0.0
    %572 = vmatprep.subr.mxu0 0.0
    %573 = vmatpush1.msra.mxu0 0.0
    %574 = vmatprep.subr.mxu0 0.0
    %575 = vmatpush1.msra.mxu0 0.0
    %576 = vmatprep.subr.mxu0 0.0
    %577 = vmatpush1.msra.mxu0 0.0
    %578 = vmatprep.subr.mxu0 0.0
    %579 = vmatpush1.msra.mxu0 0.0
    %580 = vmatprep.subr.mxu0 0.0
    %581 = vmatpush1.msra.mxu0 0.0
    %582 = vmatprep.subr.mxu0 0.0
    %583 = vmatpush1.msra.mxu0 0.0
    %584 = vmatprep.subr.mxu0 0.0
    %585 = vmatpush1.msra.mxu0 0.0
    %586 = vmatprep.subr.mxu0 0.0
    %587 = vmatpush1.msra.mxu0 0.0
    %588 = vmatprep.subr.mxu0 0.0
    %589 = vmatpush1.msra.mxu0 0.0
    %590 = vmatprep.mubr.f32.mxu0 0.0
    %v591 = vand.u32 %v522, 4294901760
    %v592 = vsub.f32 %v522, %v591
    %v593 = vand.u32 %v592, 4294901760
    %v594 = vsub.f32 %v592, %v593
    %v595 = vand.u32 %v594, 4294901760
    %596 = vmatmul.mubr.f32.gmra.mrb[0].mxu0 %v595
    %v597 = vpop.f32.mrb[0].mxu0
    %v598 = vadd.f32 0.0, %v597
    %v599 = vpop.f32.mrb[0].mxu0
    %600 = vdwg.mxu0
    %601 = vmatprep.subr.mxu0 0.0
    %v602 = vand.u32 %v38, 4294901760
    %v603 = vsub.f32 %v38, %v602
    %v604 = vand.u32 %v603, 4294901760
    %v605 = vsub.f32 %v603, %v604
    %v606 = vand.u32 %v605, 4294901760
    %607 = vmatpush1.msra.mxu0 %v606
    %608 = vmatprep.subr.mxu0 0.0
    %v609 = vand.u32 %v39, 4294901760
    %v610 = vsub.f32 %v39, %v609
    %v611 = vand.u32 %v610, 4294901760
    %v612 = vsub.f32 %v610, %v611
    %v613 = vand.u32 %v612, 4294901760
    %614 = vmatpush1.msra.mxu0 %v613
    %615 = vmatprep.subr.mxu0 0.0
    %616 = vmatpush1.msra.mxu0 0.0
    %617 = vmatprep.subr.mxu0 0.0
    %618 = vmatpush1.msra.mxu0 0.0
    %619 = vmatprep.subr.mxu0 0.0
    %620 = vmatpush1.msra.mxu0 0.0
    %621 = vmatprep.subr.mxu0 0.0
    %622 = vmatpush1.msra.mxu0 0.0
    %623 = vmatprep.subr.mxu0 0.0
    %624 = vmatpush1.msra.mxu0 0.0
    %625 = vmatprep.subr.mxu0 0.0
    %626 = vmatpush1.msra.mxu0 0.0
    %627 = vmatprep.subr.mxu0 0.0
    %628 = vmatpush1.msra.mxu0 0.0
    %629 = vmatprep.subr.mxu0 0.0
    %630 = vmatpush1.msra.mxu0 0.0
    %631 = vmatprep.subr.mxu0 0.0
    %632 = vmatpush1.msra.mxu0 0.0
    %633 = vmatprep.subr.mxu0 0.0
    %634 = vmatpush1.msra.mxu0 0.0
    %635 = vmatprep.subr.mxu0 0.0
    %636 = vmatpush1.msra.mxu0 0.0
    %637 = vmatprep.subr.mxu0 0.0
    %638 = vmatpush1.msra.mxu0 0.0
    %639 = vmatprep.subr.mxu0 0.0
    %640 = vmatpush1.msra.mxu0 0.0
    %641 = vmatprep.subr.mxu0 0.0
    %642 = vmatpush1.msra.mxu0 0.0
    %643 = vmatprep.subr.mxu0 0.0
    %644 = vmatpush1.msra.mxu0 0.0
    %645 = vmatprep.subr.mxu0 0.0
    %646 = vmatpush1.msra.mxu0 0.0
    %647 = vmatprep.subr.mxu0 0.0
    %648 = vmatpush1.msra.mxu0 0.0
    %649 = vmatprep.subr.mxu0 0.0
    %650 = vmatpush1.msra.mxu0 0.0
    %651 = vmatprep.subr.mxu0 0.0
    %652 = vmatpush1.msra.mxu0 0.0
    %653 = vmatprep.subr.mxu0 0.0
    %654 = vmatpush1.msra.mxu0 0.0
    %655 = vmatprep.subr.mxu0 0.0
    %656 = vmatpush1.msra.mxu0 0.0
    %657 = vmatprep.subr.mxu0 0.0
    %658 = vmatpush1.msra.mxu0 0.0
    %659 = vmatprep.subr.mxu0 0.0
    %660 = vmatpush1.msra.mxu0 0.0
    %661 = vmatprep.subr.mxu0 0.0
    %662 = vmatpush1.msra.mxu0 0.0
    %663 = vmatprep.subr.mxu0 0.0
    %664 = vmatpush1.msra.mxu0 0.0
    %665 = vmatprep.subr.mxu0 0.0
    %666 = vmatpush1.msra.mxu0 0.0
    %667 = vmatprep.subr.mxu0 0.0
    %668 = vmatpush1.msra.mxu0 0.0
    %669 = vmatprep.subr.mxu0 0.0
    %670 = vmatpush1.msra.mxu0 0.0
    %671 = vmatprep.subr.mxu0 0.0
    %672 = vmatpush1.msra.mxu0 0.0
    %673 = vmatprep.subr.mxu0 0.0
    %674 = vmatpush1.msra.mxu0 0.0
    %675 = vmatprep.mubr.f32.mxu0 0.0
    %v676 = vand.u32 %v522, 4294901760
    %677 = vmatmul.mubr.f32.gmra.mrb[0].mxu0 %v676
    %v678 = vpop.f32.mrb[0].mxu0
    %v679 = vadd.f32 %v598, %v678
    %v680 = vpop.f32.mrb[0].mxu0
    %681 = vdwg.mxu0
    %682 = vmatprep.subr.mxu0 0.0
    %v683 = vand.u32 %v38, 4294901760
    %v684 = vsub.f32 %v38, %v683
    %685 = vmatpush1.msra.mxu0 %v684
    %686 = vmatprep.subr.mxu0 0.0
    %v687 = vand.u32 %v39, 4294901760
    %v688 = vsub.f32 %v39, %v687
    %689 = vmatpush1.msra.mxu0 %v688
    %690 = vmatprep.subr.mxu0 0.0
    %691 = vmatpush1.msra.mxu0 0.0
    %692 = vmatprep.subr.mxu0 0.0
    %693 = vmatpush1.msra.mxu0 0.0
    %694 = vmatprep.subr.mxu0 0.0
    %695 = vmatpush1.msra.mxu0 0.0
    %696 = vmatprep.subr.mxu0 0.0
    %697 = vmatpush1.msra.mxu0 0.0
    %698 = vmatprep.subr.mxu0 0.0
    %699 = vmatpush1.msra.mxu0 0.0
    %700 = vmatprep.subr.mxu0 0.0
    %701 = vmatpush1.msra.mxu0 0.0
    %702 = vmatprep.subr.mxu0 0.0
    %703 = vmatpush1.msra.mxu0 0.0
    %704 = vmatprep.subr.mxu0 0.0
    %705 = vmatpush1.msra.mxu0 0.0
    %706 = vmatprep.subr.mxu0 0.0
    %707 = vmatpush1.msra.mxu0 0.0
    %708 = vmatprep.subr.mxu0 0.0
    %709 = vmatpush1.msra.mxu0 0.0
    %710 = vmatprep.subr.mxu0 0.0
    %711 = vmatpush1.msra.mxu0 0.0
    %712 = vmatprep.subr.mxu0 0.0
    %713 = vmatpush1.msra.mxu0 0.0
    %714 = vmatprep.subr.mxu0 0.0
    %715 = vmatpush1.msra.mxu0 0.0
    %716 = vmatprep.subr.mxu0 0.0
    %717 = vmatpush1.msra.mxu0 0.0
    %718 = vmatprep.subr.mxu0 0.0
    %719 = vmatpush1.msra.mxu0 0.0
    %720 = vmatprep.subr.mxu0 0.0
    %721 = vmatpush1.msra.mxu0 0.0
    %722 = vmatprep.subr.mxu0 0.0
    %723 = vmatpush1.msra.mxu0 0.0
    %724 = vmatprep.subr.mxu0 0.0
    %725 = vmatpush1.msra.mxu0 0.0
    %726 = vmatprep.subr.mxu0 0.0
    %727 = vmatpush1.msra.mxu0 0.0
    %728 = vmatprep.subr.mxu0 0.0
    %729 = vmatpush1.msra.mxu0 0.0
    %730 = vmatprep.subr.mxu0 0.0
    %731 = vmatpush1.msra.mxu0 0.0
    %732 = vmatprep.subr.mxu0 0.0
    %733 = vmatpush1.msra.mxu0 0.0
    %734 = vmatprep.subr.mxu0 0.0
    %735 = vmatpush1.msra.mxu0 0.0
    %736 = vmatprep.subr.mxu0 0.0
    %737 = vmatpush1.msra.mxu0 0.0
    %738 = vmatprep.subr.mxu0 0.0
    %739 = vmatpush1.msra.mxu0 0.0
    %740 = vmatprep.subr.mxu0 0.0
    %741 = vmatpush1.msra.mxu0 0.0
    %742 = vmatprep.subr.mxu0 0.0
    %743 = vmatpush1.msra.mxu0 0.0
    %744 = vmatprep.subr.mxu0 0.0
    %745 = vmatpush1.msra.mxu0 0.0
    %746 = vmatprep.subr.mxu0 0.0
    %747 = vmatpush1.msra.mxu0 0.0
    %748 = vmatprep.subr.mxu0 0.0
    %749 = vmatpush1.msra.mxu0 0.0
    %750 = vmatprep.mubr.f32.mxu0 0.0
    %v751 = vand.u32 %v522, 4294901760
    %v752 = vsub.f32 %v522, %v751
    %753 = vmatmul.mubr.f32.gmra.mrb[0].mxu0 %v752
    %v754 = vpop.f32.mrb[0].mxu0
    %v755 = vadd.f32 %v679, %v754
    %v756 = vpop.f32.mrb[0].mxu0
    %757 = vdwg.mxu0
    %758 = vmatprep.subr.mxu0 0.0
    %v759 = vand.u32 %v38, 4294901760
    %760 = vmatpush1.msra.mxu0 %v759
    %761 = vmatprep.subr.mxu0 0.0
    %v762 = vand.u32 %v39, 4294901760
    %763 = vmatpush1.msra.mxu0 %v762
    %764 = vmatprep.subr.mxu0 0.0
    %765 = vmatpush1.msra.mxu0 0.0
    %766 = vmatprep.subr.mxu0 0.0
    %767 = vmatpush1.msra.mxu0 0.0
    %768 = vmatprep.subr.mxu0 0.0
    %769 = vmatpush1.msra.mxu0 0.0
    %770 = vmatprep.subr.mxu0 0.0
    %771 = vmatpush1.msra.mxu0 0.0
    %772 = vmatprep.subr.mxu0 0.0
    %773 = vmatpush1.msra.mxu0 0.0
    %774 = vmatprep.subr.mxu0 0.0
    %775 = vmatpush1.msra.mxu0 0.0
    %776 = vmatprep.subr.mxu0 0.0
    %777 = vmatpush1.msra.mxu0 0.0
    %778 = vmatprep.subr.mxu0 0.0
    %779 = vmatpush1.msra.mxu0 0.0
    %780 = vmatprep.subr.mxu0 0.0
    %781 = vmatpush1.msra.mxu0 0.0
    %782 = vmatprep.subr.mxu0 0.0
    %783 = vmatpush1.msra.mxu0 0.0
    %784 = vmatprep.subr.mxu0 0.0
    %785 = vmatpush1.msra.mxu0 0.0
    %786 = vmatprep.subr.mxu0 0.0
    %787 = vmatpush1.msra.mxu0 0.0
    %788 = vmatprep.subr.mxu0 0.0
    %789 = vmatpush1.msra.mxu0 0.0
    %790 = vmatprep.subr.mxu0 0.0
    %791 = vmatpush1.msra.mxu0 0.0
    %792 = vmatprep.subr.mxu0 0.0
    %793 = vmatpush1.msra.mxu0 0.0
    %794 = vmatprep.subr.mxu0 0.0
    %795 = vmatpush1.msra.mxu0 0.0
    %796 = vmatprep.subr.mxu0 0.0
    %797 = vmatpush1.msra.mxu0 0.0
    %798 = vmatprep.subr.mxu0 0.0
    %799 = vmatpush1.msra.mxu0 0.0
    %800 = vmatprep.subr.mxu0 0.0
    %801 = vmatpush1.msra.mxu0 0.0
    %802 = vmatprep.subr.mxu0 0.0
    %803 = vmatpush1.msra.mxu0 0.0
    %804 = vmatprep.subr.mxu0 0.0
    %805 = vmatpush1.msra.mxu0 0.0
    %806 = vmatprep.subr.mxu0 0.0
    %807 = vmatpush1.msra.mxu0 0.0
    %808 = vmatprep.subr.mxu0 0.0
    %809 = vmatpush1.msra.mxu0 0.0
    %810 = vmatprep.subr.mxu0 0.0
    %811 = vmatpush1.msra.mxu0 0.0
    %812 = vmatprep.subr.mxu0 0.0
    %813 = vmatpush1.msra.mxu0 0.0
    %814 = vmatprep.subr.mxu0 0.0
    %815 = vmatpush1.msra.mxu0 0.0
    %816 = vmatprep.subr.mxu0 0.0
    %817 = vmatpush1.msra.mxu0 0.0
    %818 = vmatprep.subr.mxu0 0.0
    %819 = vmatpush1.msra.mxu0 0.0
    %820 = vmatprep.subr.mxu0 0.0
    %821 = vmatpush1.msra.mxu0 0.0
    %822 = vmatprep.subr.mxu0 0.0
    %823 = vmatpush1.msra.mxu0 0.0
    %824 = vmatprep.mubr.f32.mxu0 0.0
    %v825 = vand.u32 %v522, 4294901760
    %v826 = vsub.f32 %v522, %v825
    %v827 = vand.u32 %v826, 4294901760
    %828 = vmatmul.mubr.f32.gmra.mrb[0].mxu0 %v827
    %v829 = vpop.f32.mrb[0].mxu0
    %v830 = vadd.f32 %v755, %v829
    %v831 = vpop.f32.mrb[0].mxu0
    %832 = vdwg.mxu0
    %833 = vmatprep.subr.mxu0 0.0
    %v834 = vand.u32 %v38, 4294901760
    %v835 = vsub.f32 %v38, %v834
    %v836 = vand.u32 %v835, 4294901760
    %837 = vmatpush1.msra.mxu0 %v836
    %838 = vmatprep.subr.mxu0 0.0
    %v839 = vand.u32 %v39, 4294901760
    %v840 = vsub.f32 %v39, %v839
    %v841 = vand.u32 %v840, 4294901760
    %842 = vmatpush1.msra.mxu0 %v841
    %843 = vmatprep.subr.mxu0 0.0
    %844 = vmatpush1.msra.mxu0 0.0
    %845 = vmatprep.subr.mxu0 0.0
    %846 = vmatpush1.msra.mxu0 0.0
    %847 = vmatprep.subr.mxu0 0.0
    %848 = vmatpush1.msra.mxu0 0.0
    %849 = vmatprep.subr.mxu0 0.0
    %850 = vmatpush1.msra.mxu0 0.0
    %851 = vmatprep.subr.mxu0 0.0
    %852 = vmatpush1.msra.mxu0 0.0
    %853 = vmatprep.subr.mxu0 0.0
    %854 = vmatpush1.msra.mxu0 0.0
    %855 = vmatprep.subr.mxu0 0.0
    %856 = vmatpush1.msra.mxu0 0.0
    %857 = vmatprep.subr.mxu0 0.0
    %858 = vmatpush1.msra.mxu0 0.0
    %859 = vmatprep.subr.mxu0 0.0
    %860 = vmatpush1.msra.mxu0 0.0
    %861 = vmatprep.subr.mxu0 0.0
    %862 = vmatpush1.msra.mxu0 0.0
    %863 = vmatprep.subr.mxu0 0.0
    %864 = vmatpush1.msra.mxu0 0.0
    %865 = vmatprep.subr.mxu0 0.0
    %866 = vmatpush1.msra.mxu0 0.0
    %867 = vmatprep.subr.mxu0 0.0
    %868 = vmatpush1.msra.mxu0 0.0
    %869 = vmatprep.subr.mxu0 0.0
    %870 = vmatpush1.msra.mxu0 0.0
    %871 = vmatprep.subr.mxu0 0.0
    %872 = vmatpush1.msra.mxu0 0.0
    %873 = vmatprep.subr.mxu0 0.0
    %874 = vmatpush1.msra.mxu0 0.0
    %875 = vmatprep.subr.mxu0 0.0
    %876 = vmatpush1.msra.mxu0 0.0
    %877 = vmatprep.subr.mxu0 0.0
    %878 = vmatpush1.msra.mxu0 0.0
    %879 = vmatprep.subr.mxu0 0.0
    %880 = vmatpush1.msra.mxu0 0.0
    %881 = vmatprep.subr.mxu0 0.0
    %882 = vmatpush1.msra.mxu0 0.0
    %883 = vmatprep.subr.mxu0 0.0
    %884 = vmatpush1.msra.mxu0 0.0
    %885 = vmatprep.subr.mxu0 0.0
    %886 = vmatpush1.msra.mxu0 0.0
    %887 = vmatprep.subr.mxu0 0.0
    %888 = vmatpush1.msra.mxu0 0.0
    %889 = vmatprep.subr.mxu0 0.0
    %890 = vmatpush1.msra.mxu0 0.0
    %891 = vmatprep.subr.mxu0 0.0
    %892 = vmatpush1.msra.mxu0 0.0
    %893 = vmatprep.subr.mxu0 0.0
    %894 = vmatpush1.msra.mxu0 0.0
    %895 = vmatprep.subr.mxu0 0.0
    %896 = vmatpush1.msra.mxu0 0.0
    %897 = vmatprep.subr.mxu0 0.0
    %898 = vmatpush1.msra.mxu0 0.0
    %899 = vmatprep.subr.mxu0 0.0
    %900 = vmatpush1.msra.mxu0 0.0
    %901 = vmatprep.subr.mxu0 0.0
    %902 = vmatpush1.msra.mxu0 0.0
    %903 = vmatprep.mubr.f32.mxu0 0.0
    %v904 = vand.u32 %v522, 4294901760
    %905 = vmatmul.mubr.f32.gmra.mrb[0].mxu0 %v904
    %v906 = vpop.f32.mrb[0].mxu0
    %v907 = vadd.f32 %v830, %v906
    %v908 = vpop.f32.mrb[0].mxu0
    %909 = vdwg.mxu0
    %910 = vmatprep.subr.mxu0 0.0
    %v911 = vand.u32 %v38, 4294901760
    %912 = vmatpush1.msra.mxu0 %v911
    %913 = vmatprep.subr.mxu0 0.0
    %v914 = vand.u32 %v39, 4294901760
    %915 = vmatpush1.msra.mxu0 %v914
    %916 = vmatprep.subr.mxu0 0.0
    %917 = vmatpush1.msra.mxu0 0.0
    %918 = vmatprep.subr.mxu0 0.0
    %919 = vmatpush1.msra.mxu0 0.0
    %920 = vmatprep.subr.mxu0 0.0
    %921 = vmatpush1.msra.mxu0 0.0
    %922 = vmatprep.subr.mxu0 0.0
    %923 = vmatpush1.msra.mxu0 0.0
    %924 = vmatprep.subr.mxu0 0.0
    %925 = vmatpush1.msra.mxu0 0.0
    %926 = vmatprep.subr.mxu0 0.0
    %927 = vmatpush1.msra.mxu0 0.0
    %928 = vmatprep.subr.mxu0 0.0
    %929 = vmatpush1.msra.mxu0 0.0
    %930 = vmatprep.subr.mxu0 0.0
    %931 = vmatpush1.msra.mxu0 0.0
    %932 = vmatprep.subr.mxu0 0.0
    %933 = vmatpush1.msra.mxu0 0.0
    %934 = vmatprep.subr.mxu0 0.0
    %935 = vmatpush1.msra.mxu0 0.0
    %936 = vmatprep.subr.mxu0 0.0
    %937 = vmatpush1.msra.mxu0 0.0
    %938 = vmatprep.subr.mxu0 0.0
    %939 = vmatpush1.msra.mxu0 0.0
    %940 = vmatprep.subr.mxu0 0.0
    %941 = vmatpush1.msra.mxu0 0.0
    %942 = vmatprep.subr.mxu0 0.0
    %943 = vmatpush1.msra.mxu0 0.0
    %944 = vmatprep.subr.mxu0 0.0
    %945 = vmatpush1.msra.mxu0 0.0
    %946 = vmatprep.subr.mxu0 0.0
    %947 = vmatpush1.msra.mxu0 0.0
    %948 = vmatprep.subr.mxu0 0.0
    %949 = vmatpush1.msra.mxu0 0.0
    %950 = vmatprep.subr.mxu0 0.0
    %951 = vmatpush1.msra.mxu0 0.0
    %952 = vmatprep.subr.mxu0 0.0
    %953 = vmatpush1.msra.mxu0 0.0
    %954 = vmatprep.subr.mxu0 0.0
    %955 = vmatpush1.msra.mxu0 0.0
    %956 = vmatprep.subr.mxu0 0.0
    %957 = vmatpush1.msra.mxu0 0.0
    %958 = vmatprep.subr.mxu0 0.0
    %959 = vmatpush1.msra.mxu0 0.0
    %960 = vmatprep.subr.mxu0 0.0
    %961 = vmatpush1.msra.mxu0 0.0
    %962 = vmatprep.subr.mxu0 0.0
    %963 = vmatpush1.msra.mxu0 0.0
    %964 = vmatprep.subr.mxu0 0.0
    %965 = vmatpush1.msra.mxu0 0.0
    %966 = vmatprep.subr.mxu0 0.0
    %967 = vmatpush1.msra.mxu0 0.0
    %968 = vmatprep.subr.mxu0 0.0
    %969 = vmatpush1.msra.mxu0 0.0
    %970 = vmatprep.subr.mxu0 0.0
    %971 = vmatpush1.msra.mxu0 0.0
    %972 = vmatprep.subr.mxu0 0.0
    %973 = vmatpush1.msra.mxu0 0.0
    %974 = vmatprep.subr.mxu0 0.0
    %975 = vmatpush1.msra.mxu0 0.0
    %976 = vmatprep.mubr.f32.mxu0 0.0
    %v977 = vand.u32 %v522, 4294901760
    %978 = vmatmul.mubr.f32.gmra.mrb[0].mxu0 %v977
    %v979 = vpop.f32.mrb[0].mxu0
    %v980 = vadd.f32 %v907, %v979
    %v981 = vpop.f32.mrb[0].mxu0
    %982 = vdwg.mxu0
    %984 = vrot.lane.b32.xlu0 %v980, 32
    %v985 = vpop.permute.xlu0 %984
    %vm987 = vcmask 519424
    %988 = vst.msk [vmem:[#allocation7] sm:$0xf] %vm987, %v985
    %v989 = vld [vmem:[#allocation2] sm:$0xf]
    %990 = vset.pattern.permute.xlu0 2
    %991 = vperm.xlu0 %990, %v989
    %v992 = vpop.permute.xlu0 %991
    %vm993 = vcmp.eq.s32.totalorder %v992, %v41
    %v994 = vsel %vm993, 1, 0
    %v995 = vcvt.s32.f32 %v994
    %v997 = vsel %vm49, %v995, 0
    %999 = vmatprep.subr.mxu0 0.0
    %v1000 = vand.u32 %v38, 4294901760
    %1001 = vmatpush1.msra.mxu0 %v1000
    %1002 = vmatprep.subr.mxu0 0.0
    %v1003 = vand.u32 %v39, 4294901760
    %1004 = vmatpush1.msra.mxu0 %v1003
    %1005 = vmatprep.subr.mxu0 0.0
    %1006 = vmatpush1.msra.mxu0 0.0
    %1007 = vmatprep.subr.mxu0 0.0
    %1008 = vmatpush1.msra.mxu0 0.0
    %1009 = vmatprep.subr.mxu0 0.0
    %1010 = vmatpush1.msra.mxu0 0.0
    %1011 = vmatprep.subr.mxu0 0.0
    %1012 = vmatpush1.msra.mxu0 0.0
    %1013 = vmatprep.subr.mxu0 0.0
    %1014 = vmatpush1.msra.mxu0 0.0
    %1015 = vmatprep.subr.mxu0 0.0
    %1016 = vmatpush1.msra.mxu0 0.0
    %1017 = vmatprep.subr.mxu0 0.0
    %1018 = vmatpush1.msra.mxu0 0.0
    %1019 = vmatprep.subr.mxu0 0.0
    %1020 = vmatpush1.msra.mxu0 0.0
    %1021 = vmatprep.subr.mxu0 0.0
    %1022 = vmatpush1.msra.mxu0 0.0
    %1023 = vmatprep.subr.mxu0 0.0
    %1024 = vmatpush1.msra.mxu0 0.0
    %1025 = vmatprep.subr.mxu0 0.0
    %1026 = vmatpush1.msra.mxu0 0.0
    %1027 = vmatprep.subr.mxu0 0.0
    %1028 = vmatpush1.msra.mxu0 0.0
    %1029 = vmatprep.subr.mxu0 0.0
    %1030 = vmatpush1.msra.mxu0 0.0
    %1031 = vmatprep.subr.mxu0 0.0
    %1032 = vmatpush1.msra.mxu0 0.0
    %1033 = vmatprep.subr.mxu0 0.0
    %1034 = vmatpush1.msra.mxu0 0.0
    %1035 = vmatprep.subr.mxu0 0.0
    %1036 = vmatpush1.msra.mxu0 0.0
    %1037 = vmatprep.subr.mxu0 0.0
    %1038 = vmatpush1.msra.mxu0 0.0
    %1039 = vmatprep.subr.mxu0 0.0
    %1040 = vmatpush1.msra.mxu0 0.0
    %1041 = vmatprep.subr.mxu0 0.0
    %1042 = vmatpush1.msra.mxu0 0.0
    %1043 = vmatprep.subr.mxu0 0.0
    %1044 = vmatpush1.msra.mxu0 0.0
    %1045 = vmatprep.subr.mxu0 0.0
    %1046 = vmatpush1.msra.mxu0 0.0
    %1047 = vmatprep.subr.mxu0 0.0
    %1048 = vmatpush1.msra.mxu0 0.0
    %1049 = vmatprep.subr.mxu0 0.0
    %1050 = vmatpush1.msra.mxu0 0.0
    %1051 = vmatprep.subr.mxu0 0.0
    %1052 = vmatpush1.msra.mxu0 0.0
    %1053 = vmatprep.subr.mxu0 0.0
    %1054 = vmatpush1.msra.mxu0 0.0
    %1055 = vmatprep.subr.mxu0 0.0
    %1056 = vmatpush1.msra.mxu0 0.0
    %1057 = vmatprep.subr.mxu0 0.0
    %1058 = vmatpush1.msra.mxu0 0.0
    %1059 = vmatprep.subr.mxu0 0.0
    %1060 = vmatpush1.msra.mxu0 0.0
    %1061 = vmatprep.subr.mxu0 0.0
    %1062 = vmatpush1.msra.mxu0 0.0
    %1063 = vmatprep.subr.mxu0 0.0
    %1064 = vmatpush1.msra.mxu0 0.0
    %1065 = vmatprep.mubr.f32.mxu0 0.0
    %v1066 = vand.u32 %v997, 4294901760
    %v1067 = vsub.f32 %v997, %v1066
    %v1068 = vand.u32 %v1067, 4294901760
    %v1069 = vsub.f32 %v1067, %v1068
    %v1070 = vand.u32 %v1069, 4294901760
    %1071 = vmatmul.mubr.f32.gmra.mrb[0].mxu0 %v1070
    %v1072 = vpop.f32.mrb[0].mxu0
    %v1073 = vadd.f32 0.0, %v1072
    %v1074 = vpop.f32.mrb[0].mxu0
    %1075 = vdwg.mxu0
    %1076 = vmatprep.subr.mxu0 0.0
    %v1077 = vand.u32 %v38, 4294901760
    %v1078 = vsub.f32 %v38, %v1077
    %v1079 = vand.u32 %v1078, 4294901760
    %v1080 = vsub.f32 %v1078, %v1079
    %v1081 = vand.u32 %v1080, 4294901760
    %1082 = vmatpush1.msra.mxu0 %v1081
    %1083 = vmatprep.subr.mxu0 0.0
    %v1084 = vand.u32 %v39, 4294901760
    %v1085 = vsub.f32 %v39, %v1084
    %v1086 = vand.u32 %v1085, 4294901760
    %v1087 = vsub.f32 %v1085, %v1086
    %v1088 = vand.u32 %v1087, 4294901760
    %1089 = vmatpush1.msra.mxu0 %v1088
    %1090 = vmatprep.subr.mxu0 0.0
    %1091 = vmatpush1.msra.mxu0 0.0
    %1092 = vmatprep.subr.mxu0 0.0
    %1093 = vmatpush1.msra.mxu0 0.0
    %1094 = vmatprep.subr.mxu0 0.0
    %1095 = vmatpush1.msra.mxu0 0.0
    %1096 = vmatprep.subr.mxu0 0.0
    %1097 = vmatpush1.msra.mxu0 0.0
    %1098 = vmatprep.subr.mxu0 0.0
    %1099 = vmatpush1.msra.mxu0 0.0
    %1100 = vmatprep.subr.mxu0 0.0
    %1101 = vmatpush1.msra.mxu0 0.0
    %1102 = vmatprep.subr.mxu0 0.0
    %1103 = vmatpush1.msra.mxu0 0.0
    %1104 = vmatprep.subr.mxu0 0.0
    %1105 = vmatpush1.msra.mxu0 0.0
    %1106 = vmatprep.subr.mxu0 0.0
    %1107 = vmatpush1.msra.mxu0 0.0
    %1108 = vmatprep.subr.mxu0 0.0
    %1109 = vmatpush1.msra.mxu0 0.0
    %1110 = vmatprep.subr.mxu0 0.0
    %1111 = vmatpush1.msra.mxu0 0.0
    %1112 = vmatprep.subr.mxu0 0.0
    %1113 = vmatpush1.msra.mxu0 0.0
    %1114 = vmatprep.subr.mxu0 0.0
    %1115 = vmatpush1.msra.mxu0 0.0
    %1116 = vmatprep.subr.mxu0 0.0
    %1117 = vmatpush1.msra.mxu0 0.0
    %1118 = vmatprep.subr.mxu0 0.0
    %1119 = vmatpush1.msra.mxu0 0.0
    %1120 = vmatprep.subr.mxu0 0.0
    %1121 = vmatpush1.msra.mxu0 0.0
    %1122 = vmatprep.subr.mxu0 0.0
    %1123 = vmatpush1.msra.mxu0 0.0
    %1124 = vmatprep.subr.mxu0 0.0
    %1125 = vmatpush1.msra.mxu0 0.0
    %1126 = vmatprep.subr.mxu0 0.0
    %1127 = vmatpush1.msra.mxu0 0.0
    %1128 = vmatprep.subr.mxu0 0.0
    %1129 = vmatpush1.msra.mxu0 0.0
    %1130 = vmatprep.subr.mxu0 0.0
    %1131 = vmatpush1.msra.mxu0 0.0
    %1132 = vmatprep.subr.mxu0 0.0
    %1133 = vmatpush1.msra.mxu0 0.0
    %1134 = vmatprep.subr.mxu0 0.0
    %1135 = vmatpush1.msra.mxu0 0.0
    %1136 = vmatprep.subr.mxu0 0.0
    %1137 = vmatpush1.msra.mxu0 0.0
    %1138 = vmatprep.subr.mxu0 0.0
    %1139 = vmatpush1.msra.mxu0 0.0
    %1140 = vmatprep.subr.mxu0 0.0
    %1141 = vmatpush1.msra.mxu0 0.0
    %1142 = vmatprep.subr.mxu0 0.0
    %1143 = vmatpush1.msra.mxu0 0.0
    %1144 = vmatprep.subr.mxu0 0.0
    %1145 = vmatpush1.msra.mxu0 0.0
    %1146 = vmatprep.subr.mxu0 0.0
    %1147 = vmatpush1.msra.mxu0 0.0
    %1148 = vmatprep.subr.mxu0 0.0
    %1149 = vmatpush1.msra.mxu0 0.0
    %1150 = vmatprep.mubr.f32.mxu0 0.0
    %v1151 = vand.u32 %v997, 4294901760
    %1152 = vmatmul.mubr.f32.gmra.mrb[0].mxu0 %v1151
    %v1153 = vpop.f32.mrb[0].mxu0
    %v1154 = vadd.f32 %v1073, %v1153
    %v1155 = vpop.f32.mrb[0].mxu0
    %1156 = vdwg.mxu0
    %1157 = vmatprep.subr.mxu0 0.0
    %v1158 = vand.u32 %v38, 4294901760
    %v1159 = vsub.f32 %v38, %v1158
    %1160 = vmatpush1.msra.mxu0 %v1159
    %1161 = vmatprep.subr.mxu0 0.0
    %v1162 = vand.u32 %v39, 4294901760
    %v1163 = vsub.f32 %v39, %v1162
    %1164 = vmatpush1.msra.mxu0 %v1163
    %1165 = vmatprep.subr.mxu0 0.0
    %1166 = vmatpush1.msra.mxu0 0.0
    %1167 = vmatprep.subr.mxu0 0.0
    %1168 = vmatpush1.msra.mxu0 0.0
    %1169 = vmatprep.subr.mxu0 0.0
    %1170 = vmatpush1.msra.mxu0 0.0
    %1171 = vmatprep.subr.mxu0 0.0
    %1172 = vmatpush1.msra.mxu0 0.0
    %1173 = vmatprep.subr.mxu0 0.0
    %1174 = vmatpush1.msra.mxu0 0.0
    %1175 = vmatprep.subr.mxu0 0.0
    %1176 = vmatpush1.msra.mxu0 0.0
    %1177 = vmatprep.subr.mxu0 0.0
    %1178 = vmatpush1.msra.mxu0 0.0
    %1179 = vmatprep.subr.mxu0 0.0
    %1180 = vmatpush1.msra.mxu0 0.0
    %1181 = vmatprep.subr.mxu0 0.0
    %1182 = vmatpush1.msra.mxu0 0.0
    %1183 = vmatprep.subr.mxu0 0.0
    %1184 = vmatpush1.msra.mxu0 0.0
    %1185 = vmatprep.subr.mxu0 0.0
    %1186 = vmatpush1.msra.mxu0 0.0
    %1187 = vmatprep.subr.mxu0 0.0
    %1188 = vmatpush1.msra.mxu0 0.0
    %1189 = vmatprep.subr.mxu0 0.0
    %1190 = vmatpush1.msra.mxu0 0.0
    %1191 = vmatprep.subr.mxu0 0.0
    %1192 = vmatpush1.msra.mxu0 0.0
    %1193 = vmatprep.subr.mxu0 0.0
    %1194 = vmatpush1.msra.mxu0 0.0
    %1195 = vmatprep.subr.mxu0 0.0
    %1196 = vmatpush1.msra.mxu0 0.0
    %1197 = vmatprep.subr.mxu0 0.0
    %1198 = vmatpush1.msra.mxu0 0.0
    %1199 = vmatprep.subr.mxu0 0.0
    %1200 = vmatpush1.msra.mxu0 0.0
    %1201 = vmatprep.subr.mxu0 0.0
    %1202 = vmatpush1.msra.mxu0 0.0
    %1203 = vmatprep.subr.mxu0 0.0
    %1204 = vmatpush1.msra.mxu0 0.0
    %1205 = vmatprep.subr.mxu0 0.0
    %1206 = vmatpush1.msra.mxu0 0.0
    %1207 = vmatprep.subr.mxu0 0.0
    %1208 = vmatpush1.msra.mxu0 0.0
    %1209 = vmatprep.subr.mxu0 0.0
    %1210 = vmatpush1.msra.mxu0 0.0
    %1211 = vmatprep.subr.mxu0 0.0
    %1212 = vmatpush1.msra.mxu0 0.0
    %1213 = vmatprep.subr.mxu0 0.0
    %1214 = vmatpush1.msra.mxu0 0.0
    %1215 = vmatprep.subr.mxu0 0.0
    %1216 = vmatpush1.msra.mxu0 0.0
    %1217 = vmatprep.subr.mxu0 0.0
    %1218 = vmatpush1.msra.mxu0 0.0
    %1219 = vmatprep.subr.mxu0 0.0
    %1220 = vmatpush1.msra.mxu0 0.0
    %1221 = vmatprep.subr.mxu0 0.0
    %1222 = vmatpush1.msra.mxu0 0.0
    %1223 = vmatprep.subr.mxu0 0.0
    %1224 = vmatpush1.msra.mxu0 0.0
    %1225 = vmatprep.mubr.f32.mxu0 0.0
    %v1226 = vand.u32 %v997, 4294901760
    %v1227 = vsub.f32 %v997, %v1226
    %1228 = vmatmul.mubr.f32.gmra.mrb[0].mxu0 %v1227
    %v1229 = vpop.f32.mrb[0].mxu0
    %v1230 = vadd.f32 %v1154, %v1229
    %v1231 = vpop.f32.mrb[0].mxu0
    %1232 = vdwg.mxu0
    %1233 = vmatprep.subr.mxu0 0.0
    %v1234 = vand.u32 %v38, 4294901760
    %1235 = vmatpush1.msra.mxu0 %v1234
    %1236 = vmatprep.subr.mxu0 0.0
    %v1237 = vand.u32 %v39, 4294901760
    %1238 = vmatpush1.msra.mxu0 %v1237
    %1239 = vmatprep.subr.mxu0 0.0
    %1240 = vmatpush1.msra.mxu0 0.0
    %1241 = vmatprep.subr.mxu0 0.0
    %1242 = vmatpush1.msra.mxu0 0.0
    %1243 = vmatprep.subr.mxu0 0.0
    %1244 = vmatpush1.msra.mxu0 0.0
    %1245 = vmatprep.subr.mxu0 0.0
    %1246 = vmatpush1.msra.mxu0 0.0
    %1247 = vmatprep.subr.mxu0 0.0
    %1248 = vmatpush1.msra.mxu0 0.0
    %1249 = vmatprep.subr.mxu0 0.0
    %1250 = vmatpush1.msra.mxu0 0.0
    %1251 = vmatprep.subr.mxu0 0.0
    %1252 = vmatpush1.msra.mxu0 0.0
    %1253 = vmatprep.subr.mxu0 0.0
    %1254 = vmatpush1.msra.mxu0 0.0
    %1255 = vmatprep.subr.mxu0 0.0
    %1256 = vmatpush1.msra.mxu0 0.0
    %1257 = vmatprep.subr.mxu0 0.0
    %1258 = vmatpush1.msra.mxu0 0.0
    %1259 = vmatprep.subr.mxu0 0.0
    %1260 = vmatpush1.msra.mxu0 0.0
    %1261 = vmatprep.subr.mxu0 0.0
    %1262 = vmatpush1.msra.mxu0 0.0
    %1263 = vmatprep.subr.mxu0 0.0
    %1264 = vmatpush1.msra.mxu0 0.0
    %1265 = vmatprep.subr.mxu0 0.0
    %1266 = vmatpush1.msra.mxu0 0.0
    %1267 = vmatprep.subr.mxu0 0.0
    %1268 = vmatpush1.msra.mxu0 0.0
    %1269 = vmatprep.subr.mxu0 0.0
    %1270 = vmatpush1.msra.mxu0 0.0
    %1271 = vmatprep.subr.mxu0 0.0
    %1272 = vmatpush1.msra.mxu0 0.0
    %1273 = vmatprep.subr.mxu0 0.0
    %1274 = vmatpush1.msra.mxu0 0.0
    %1275 = vmatprep.subr.mxu0 0.0
    %1276 = vmatpush1.msra.mxu0 0.0
    %1277 = vmatprep.subr.mxu0 0.0
    %1278 = vmatpush1.msra.mxu0 0.0
    %1279 = vmatprep.subr.mxu0 0.0
    %1280 = vmatpush1.msra.mxu0 0.0
    %1281 = vmatprep.subr.mxu0 0.0
    %1282 = vmatpush1.msra.mxu0 0.0
    %1283 = vmatprep.subr.mxu0 0.0
    %1284 = vmatpush1.msra.mxu0 0.0
    %1285 = vmatprep.subr.mxu0 0.0
    %1286 = vmatpush1.msra.mxu0 0.0
    %1287 = vmatprep.subr.mxu0 0.0
    %1288 = vmatpush1.msra.mxu0 0.0
    %1289 = vmatprep.subr.mxu0 0.0
    %1290 = vmatpush1.msra.mxu0 0.0
    %1291 = vmatprep.subr.mxu0 0.0
    %1292 = vmatpush1.msra.mxu0 0.0
    %1293 = vmatprep.subr.mxu0 0.0
    %1294 = vmatpush1.msra.mxu0 0.0
    %1295 = vmatprep.subr.mxu0 0.0
    %1296 = vmatpush1.msra.mxu0 0.0
    %1297 = vmatprep.subr.mxu0 0.0
    %1298 = vmatpush1.msra.mxu0 0.0
    %1299 = vmatprep.mubr.f32.mxu0 0.0
    %v1300 = vand.u32 %v997, 4294901760
    %v1301 = vsub.f32 %v997, %v1300
    %v1302 = vand.u32 %v1301, 4294901760
    %1303 = vmatmul.mubr.f32.gmra.mrb[0].mxu0 %v1302
    %v1304 = vpop.f32.mrb[0].mxu0
    %v1305 = vadd.f32 %v1230, %v1304
    %v1306 = vpop.f32.mrb[0].mxu0
    %1307 = vdwg.mxu0
    %1308 = vmatprep.subr.mxu0 0.0
    %v1309 = vand.u32 %v38, 4294901760
    %v1310 = vsub.f32 %v38, %v1309
    %v1311 = vand.u32 %v1310, 4294901760
    %1312 = vmatpush1.msra.mxu0 %v1311
    %1313 = vmatprep.subr.mxu0 0.0
    %v1314 = vand.u32 %v39, 4294901760
    %v1315 = vsub.f32 %v39, %v1314
    %v1316 = vand.u32 %v1315, 4294901760
    %1317 = vmatpush1.msra.mxu0 %v1316
    %1318 = vmatprep.subr.mxu0 0.0
    %1319 = vmatpush1.msra.mxu0 0.0
    %1320 = vmatprep.subr.mxu0 0.0
    %1321 = vmatpush1.msra.mxu0 0.0
    %1322 = vmatprep.subr.mxu0 0.0
    %1323 = vmatpush1.msra.mxu0 0.0
    %1324 = vmatprep.subr.mxu0 0.0
    %1325 = vmatpush1.msra.mxu0 0.0
    %1326 = vmatprep.subr.mxu0 0.0
    %1327 = vmatpush1.msra.mxu0 0.0
    %1328 = vmatprep.subr.mxu0 0.0
    %1329 = vmatpush1.msra.mxu0 0.0
    %1330 = vmatprep.subr.mxu0 0.0
    %1331 = vmatpush1.msra.mxu0 0.0
    %1332 = vmatprep.subr.mxu0 0.0
    %1333 = vmatpush1.msra.mxu0 0.0
    %1334 = vmatprep.subr.mxu0 0.0
    %1335 = vmatpush1.msra.mxu0 0.0
    %1336 = vmatprep.subr.mxu0 0.0
    %1337 = vmatpush1.msra.mxu0 0.0
    %1338 = vmatprep.subr.mxu0 0.0
    %1339 = vmatpush1.msra.mxu0 0.0
    %1340 = vmatprep.subr.mxu0 0.0
    %1341 = vmatpush1.msra.mxu0 0.0
    %1342 = vmatprep.subr.mxu0 0.0
    %1343 = vmatpush1.msra.mxu0 0.0
    %1344 = vmatprep.subr.mxu0 0.0
    %1345 = vmatpush1.msra.mxu0 0.0
    %1346 = vmatprep.subr.mxu0 0.0
    %1347 = vmatpush1.msra.mxu0 0.0
    %1348 = vmatprep.subr.mxu0 0.0
    %1349 = vmatpush1.msra.mxu0 0.0
    %1350 = vmatprep.subr.mxu0 0.0
    %1351 = vmatpush1.msra.mxu0 0.0
    %1352 = vmatprep.subr.mxu0 0.0
    %1353 = vmatpush1.msra.mxu0 0.0
    %1354 = vmatprep.subr.mxu0 0.0
    %1355 = vmatpush1.msra.mxu0 0.0
    %1356 = vmatprep.subr.mxu0 0.0
    %1357 = vmatpush1.msra.mxu0 0.0
    %1358 = vmatprep.subr.mxu0 0.0
    %1359 = vmatpush1.msra.mxu0 0.0
    %1360 = vmatprep.subr.mxu0 0.0
    %1361 = vmatpush1.msra.mxu0 0.0
    %1362 = vmatprep.subr.mxu0 0.0
    %1363 = vmatpush1.msra.mxu0 0.0
    %1364 = vmatprep.subr.mxu0 0.0
    %1365 = vmatpush1.msra.mxu0 0.0
    %1366 = vmatprep.subr.mxu0 0.0
    %1367 = vmatpush1.msra.mxu0 0.0
    %1368 = vmatprep.subr.mxu0 0.0
    %1369 = vmatpush1.msra.mxu0 0.0
    %1370 = vmatprep.subr.mxu0 0.0
    %1371 = vmatpush1.msra.mxu0 0.0
    %1372 = vmatprep.subr.mxu0 0.0
    %1373 = vmatpush1.msra.mxu0 0.0
    %1374 = vmatprep.subr.mxu0 0.0
    %1375 = vmatpush1.msra.mxu0 0.0
    %1376 = vmatprep.subr.mxu0 0.0
    %1377 = vmatpush1.msra.mxu0 0.0
    %1378 = vmatprep.mubr.f32.mxu0 0.0
    %v1379 = vand.u32 %v997, 4294901760
    %1380 = vmatmul.mubr.f32.gmra.mrb[0].mxu0 %v1379
    %v1381 = vpop.f32.mrb[0].mxu0
    %v1382 = vadd.f32 %v1305, %v1381
    %v1383 = vpop.f32.mrb[0].mxu0
    %1384 = vdwg.mxu0
    %1385 = vmatprep.subr.mxu0 0.0
    %v1386 = vand.u32 %v38, 4294901760
    %1387 = vmatpush1.msra.mxu0 %v1386
    %1388 = vmatprep.subr.mxu0 0.0
    %v1389 = vand.u32 %v39, 4294901760
    %1390 = vmatpush1.msra.mxu0 %v1389
    %1391 = vmatprep.subr.mxu0 0.0
    %1392 = vmatpush1.msra.mxu0 0.0
    %1393 = vmatprep.subr.mxu0 0.0
    %1394 = vmatpush1.msra.mxu0 0.0
    %1395 = vmatprep.subr.mxu0 0.0
    %1396 = vmatpush1.msra.mxu0 0.0
    %1397 = vmatprep.subr.mxu0 0.0
    %1398 = vmatpush1.msra.mxu0 0.0
    %1399 = vmatprep.subr.mxu0 0.0
    %1400 = vmatpush1.msra.mxu0 0.0
    %1401 = vmatprep.subr.mxu0 0.0
    %1402 = vmatpush1.msra.mxu0 0.0
    %1403 = vmatprep.subr.mxu0 0.0
    %1404 = vmatpush1.msra.mxu0 0.0
    %1405 = vmatprep.subr.mxu0 0.0
    %1406 = vmatpush1.msra.mxu0 0.0
    %1407 = vmatprep.subr.mxu0 0.0
    %1408 = vmatpush1.msra.mxu0 0.0
    %1409 = vmatprep.subr.mxu0 0.0
    %1410 = vmatpush1.msra.mxu0 0.0
    %1411 = vmatprep.subr.mxu0 0.0
    %1412 = vmatpush1.msra.mxu0 0.0
    %1413 = vmatprep.subr.mxu0 0.0
    %1414 = vmatpush1.msra.mxu0 0.0
    %1415 = vmatprep.subr.mxu0 0.0
    %1416 = vmatpush1.msra.mxu0 0.0
    %1417 = vmatprep.subr.mxu0 0.0
    %1418 = vmatpush1.msra.mxu0 0.0
    %1419 = vmatprep.subr.mxu0 0.0
    %1420 = vmatpush1.msra.mxu0 0.0
    %1421 = vmatprep.subr.mxu0 0.0
    %1422 = vmatpush1.msra.mxu0 0.0
    %1423 = vmatprep.subr.mxu0 0.0
    %1424 = vmatpush1.msra.mxu0 0.0
    %1425 = vmatprep.subr.mxu0 0.0
    %1426 = vmatpush1.msra.mxu0 0.0
    %1427 = vmatprep.subr.mxu0 0.0
    %1428 = vmatpush1.msra.mxu0 0.0
    %1429 = vmatprep.subr.mxu0 0.0
    %1430 = vmatpush1.msra.mxu0 0.0
    %1431 = vmatprep.subr.mxu0 0.0
    %1432 = vmatpush1.msra.mxu0 0.0
    %1433 = vmatprep.subr.mxu0 0.0
    %1434 = vmatpush1.msra.mxu0 0.0
    %1435 = vmatprep.subr.mxu0 0.0
    %1436 = vmatpush1.msra.mxu0 0.0
    %1437 = vmatprep.subr.mxu0 0.0
    %1438 = vmatpush1.msra.mxu0 0.0
    %1439 = vmatprep.subr.mxu0 0.0
    %1440 = vmatpush1.msra.mxu0 0.0
    %1441 = vmatprep.subr.mxu0 0.0
    %1442 = vmatpush1.msra.mxu0 0.0
    %1443 = vmatprep.subr.mxu0 0.0
    %1444 = vmatpush1.msra.mxu0 0.0
    %1445 = vmatprep.subr.mxu0 0.0
    %1446 = vmatpush1.msra.mxu0 0.0
    %1447 = vmatprep.subr.mxu0 0.0
    %1448 = vmatpush1.msra.mxu0 0.0
    %1449 = vmatprep.subr.mxu0 0.0
    %1450 = vmatpush1.msra.mxu0 0.0
    %1451 = vmatprep.mubr.f32.mxu0 0.0
    %v1452 = vand.u32 %v997, 4294901760
    %1453 = vmatmul.mubr.f32.gmra.mrb[0].mxu0 %v1452
    %v1454 = vpop.f32.mrb[0].mxu0
    %v1455 = vadd.f32 %v1382, %v1454
    %v1456 = vpop.f32.mrb[0].mxu0
    %1457 = vdwg.mxu0
    %1459 = vrot.lane.b32.xlu0 %v1455, 64
    %v1460 = vpop.permute.xlu0 %1459
    %vm1462 = vcmask 781824
    %1463 = vst.msk [vmem:[#allocation7] sm:$0xf] %vm1462, %v1460
    %v1464 = vld [vmem:[#allocation2] sm:$0xf]
    %1465 = vset.pattern.permute.xlu0 3
    %1466 = vperm.xlu0 %1465, %v1464
    %v1467 = vpop.permute.xlu0 %1466
    %vm1468 = vcmp.eq.s32.totalorder %v1467, %v41
    %v1469 = vsel %vm1468, 1, 0
    %v1470 = vcvt.s32.f32 %v1469
    %v1472 = vsel %vm49, %v1470, 0
    %1474 = vmatprep.subr.mxu0 0.0
    %v1475 = vand.u32 %v38, 4294901760
    %1476 = vmatpush1.msra.mxu0 %v1475
    %1477 = vmatprep.subr.mxu0 0.0
    %v1478 = vand.u32 %v39, 4294901760
    %1479 = vmatpush1.msra.mxu0 %v1478
    %1480 = vmatprep.subr.mxu0 0.0
    %1481 = vmatpush1.msra.mxu0 0.0
    %1482 = vmatprep.subr.mxu0 0.0
    %1483 = vmatpush1.msra.mxu0 0.0
    %1484 = vmatprep.subr.mxu0 0.0
    %1485 = vmatpush1.msra.mxu0 0.0
    %1486 = vmatprep.subr.mxu0 0.0
    %1487 = vmatpush1.msra.mxu0 0.0
    %1488 = vmatprep.subr.mxu0 0.0
    %1489 = vmatpush1.msra.mxu0 0.0
    %1490 = vmatprep.subr.mxu0 0.0
    %1491 = vmatpush1.msra.mxu0 0.0
    %1492 = vmatprep.subr.mxu0 0.0
    %1493 = vmatpush1.msra.mxu0 0.0
    %1494 = vmatprep.subr.mxu0 0.0
    %1495 = vmatpush1.msra.mxu0 0.0
    %1496 = vmatprep.subr.mxu0 0.0
    %1497 = vmatpush1.msra.mxu0 0.0
    %1498 = vmatprep.subr.mxu0 0.0
    %1499 = vmatpush1.msra.mxu0 0.0
    %1500 = vmatprep.subr.mxu0 0.0
    %1501 = vmatpush1.msra.mxu0 0.0
    %1502 = vmatprep.subr.mxu0 0.0
    %1503 = vmatpush1.msra.mxu0 0.0
    %1504 = vmatprep.subr.mxu0 0.0
    %1505 = vmatpush1.msra.mxu0 0.0
    %1506 = vmatprep.subr.mxu0 0.0
    %1507 = vmatpush1.msra.mxu0 0.0
    %1508 = vmatprep.subr.mxu0 0.0
    %1509 = vmatpush1.msra.mxu0 0.0
    %1510 = vmatprep.subr.mxu0 0.0
    %1511 = vmatpush1.msra.mxu0 0.0
    %1512 = vmatprep.subr.mxu0 0.0
    %1513 = vmatpush1.msra.mxu0 0.0
    %1514 = vmatprep.subr.mxu0 0.0
    %1515 = vmatpush1.msra.mxu0 0.0
    %1516 = vmatprep.subr.mxu0 0.0
    %1517 = vmatpush1.msra.mxu0 0.0
    %1518 = vmatprep.subr.mxu0 0.0
    %1519 = vmatpush1.msra.mxu0 0.0
    %1520 = vmatprep.subr.mxu0 0.0
    %1521 = vmatpush1.msra.mxu0 0.0
    %1522 = vmatprep.subr.mxu0 0.0
    %1523 = vmatpush1.msra.mxu0 0.0
    %1524 = vmatprep.subr.mxu0 0.0
    %1525 = vmatpush1.msra.mxu0 0.0
    %1526 = vmatprep.subr.mxu0 0.0
    %1527 = vmatpush1.msra.mxu0 0.0
    %1528 = vmatprep.subr.mxu0 0.0
    %1529 = vmatpush1.msra.mxu0 0.0
    %1530 = vmatprep.subr.mxu0 0.0
    %1531 = vmatpush1.msra.mxu0 0.0
    %1532 = vmatprep.subr.mxu0 0.0
    %1533 = vmatpush1.msra.mxu0 0.0
    %1534 = vmatprep.subr.mxu0 0.0
    %1535 = vmatpush1.msra.mxu0 0.0
    %1536 = vmatprep.subr.mxu0 0.0
    %1537 = vmatpush1.msra.mxu0 0.0
    %1538 = vmatprep.subr.mxu0 0.0
    %1539 = vmatpush1.msra.mxu0 0.0
    %1540 = vmatprep.mubr.f32.mxu0 0.0
    %v1541 = vand.u32 %v1472, 4294901760
    %v1542 = vsub.f32 %v1472, %v1541
    %v1543 = vand.u32 %v1542, 4294901760
    %v1544 = vsub.f32 %v1542, %v1543
    %v1545 = vand.u32 %v1544, 4294901760
    %1546 = vmatmul.mubr.f32.gmra.mrb[0].mxu0 %v1545
    %v1547 = vpop.f32.mrb[0].mxu0
    %v1548 = vadd.f32 0.0, %v1547
    %v1549 = vpop.f32.mrb[0].mxu0
    %1550 = vdwg.mxu0
    %1551 = vmatprep.subr.mxu0 0.0
    %v1552 = vand.u32 %v38, 4294901760
    %v1553 = vsub.f32 %v38, %v1552
    %v1554 = vand.u32 %v1553, 4294901760
    %v1555 = vsub.f32 %v1553, %v1554
    %v1556 = vand.u32 %v1555, 4294901760
    %1557 = vmatpush1.msra.mxu0 %v1556
    %1558 = vmatprep.subr.mxu0 0.0
    %v1559 = vand.u32 %v39, 4294901760
    %v1560 = vsub.f32 %v39, %v1559
    %v1561 = vand.u32 %v1560, 4294901760
    %v1562 = vsub.f32 %v1560, %v1561
    %v1563 = vand.u32 %v1562, 4294901760
    %1564 = vmatpush1.msra.mxu0 %v1563
    %1565 = vmatprep.subr.mxu0 0.0
    %1566 = vmatpush1.msra.mxu0 0.0
    %1567 = vmatprep.subr.mxu0 0.0
    %1568 = vmatpush1.msra.mxu0 0.0
    %1569 = vmatprep.subr.mxu0 0.0
    %1570 = vmatpush1.msra.mxu0 0.0
    %1571 = vmatprep.subr.mxu0 0.0
    %1572 = vmatpush1.msra.mxu0 0.0
    %1573 = vmatprep.subr.mxu0 0.0
    %1574 = vmatpush1.msra.mxu0 0.0
    %1575 = vmatprep.subr.mxu0 0.0
    %1576 = vmatpush1.msra.mxu0 0.0
    %1577 = vmatprep.subr.mxu0 0.0
    %1578 = vmatpush1.msra.mxu0 0.0
    %1579 = vmatprep.subr.mxu0 0.0
    %1580 = vmatpush1.msra.mxu0 0.0
    %1581 = vmatprep.subr.mxu0 0.0
    %1582 = vmatpush1.msra.mxu0 0.0
    %1583 = vmatprep.subr.mxu0 0.0
    %1584 = vmatpush1.msra.mxu0 0.0
    %1585 = vmatprep.subr.mxu0 0.0
    %1586 = vmatpush1.msra.mxu0 0.0
    %1587 = vmatprep.subr.mxu0 0.0
    %1588 = vmatpush1.msra.mxu0 0.0
    %1589 = vmatprep.subr.mxu0 0.0
    %1590 = vmatpush1.msra.mxu0 0.0
    %1591 = vmatprep.subr.mxu0 0.0
    %1592 = vmatpush1.msra.mxu0 0.0
    %1593 = vmatprep.subr.mxu0 0.0
    %1594 = vmatpush1.msra.mxu0 0.0
    %1595 = vmatprep.subr.mxu0 0.0
    %1596 = vmatpush1.msra.mxu0 0.0
    %1597 = vmatprep.subr.mxu0 0.0
    %1598 = vmatpush1.msra.mxu0 0.0
    %1599 = vmatprep.subr.mxu0 0.0
    %1600 = vmatpush1.msra.mxu0 0.0
    %1601 = vmatprep.subr.mxu0 0.0
    %1602 = vmatpush1.msra.mxu0 0.0
    %1603 = vmatprep.subr.mxu0 0.0
    %1604 = vmatpush1.msra.mxu0 0.0
    %1605 = vmatprep.subr.mxu0 0.0
    %1606 = vmatpush1.msra.mxu0 0.0
    %1607 = vmatprep.subr.mxu0 0.0
    %1608 = vmatpush1.msra.mxu0 0.0
    %1609 = vmatprep.subr.mxu0 0.0
    %1610 = vmatpush1.msra.mxu0 0.0
    %1611 = vmatprep.subr.mxu0 0.0
    %1612 = vmatpush1.msra.mxu0 0.0
    %1613 = vmatprep.subr.mxu0 0.0
    %1614 = vmatpush1.msra.mxu0 0.0
    %1615 = vmatprep.subr.mxu0 0.0
    %1616 = vmatpush1.msra.mxu0 0.0
    %1617 = vmatprep.subr.mxu0 0.0
    %1618 = vmatpush1.msra.mxu0 0.0
    %1619 = vmatprep.subr.mxu0 0.0
    %1620 = vmatpush1.msra.mxu0 0.0
    %1621 = vmatprep.subr.mxu0 0.0
    %1622 = vmatpush1.msra.mxu0 0.0
    %1623 = vmatprep.subr.mxu0 0.0
    %1624 = vmatpush1.msra.mxu0 0.0
    %1625 = vmatprep.mubr.f32.mxu0 0.0
    %v1626 = vand.u32 %v1472, 4294901760
    %1627 = vmatmul.mubr.f32.gmra.mrb[0].mxu0 %v1626
    %v1628 = vpop.f32.mrb[0].mxu0
    %v1629 = vadd.f32 %v1548, %v1628
    %v1630 = vpop.f32.mrb[0].mxu0
    %1631 = vdwg.mxu0
    %1632 = vmatprep.subr.mxu0 0.0
    %v1633 = vand.u32 %v38, 4294901760
    %v1634 = vsub.f32 %v38, %v1633
    %1635 = vmatpush1.msra.mxu0 %v1634
    %1636 = vmatprep.subr.mxu0 0.0
    %v1637 = vand.u32 %v39, 4294901760
    %v1638 = vsub.f32 %v39, %v1637
    %1639 = vmatpush1.msra.mxu0 %v1638
    %1640 = vmatprep.subr.mxu0 0.0
    %1641 = vmatpush1.msra.mxu0 0.0
    %1642 = vmatprep.subr.mxu0 0.0
    %1643 = vmatpush1.msra.mxu0 0.0
    %1644 = vmatprep.subr.mxu0 0.0
    %1645 = vmatpush1.msra.mxu0 0.0
    %1646 = vmatprep.subr.mxu0 0.0
    %1647 = vmatpush1.msra.mxu0 0.0
    %1648 = vmatprep.subr.mxu0 0.0
    %1649 = vmatpush1.msra.mxu0 0.0
    %1650 = vmatprep.subr.mxu0 0.0
    %1651 = vmatpush1.msra.mxu0 0.0
    %1652 = vmatprep.subr.mxu0 0.0
    %1653 = vmatpush1.msra.mxu0 0.0
    %1654 = vmatprep.subr.mxu0 0.0
    %1655 = vmatpush1.msra.mxu0 0.0
    %1656 = vmatprep.subr.mxu0 0.0
    %1657 = vmatpush1.msra.mxu0 0.0
    %1658 = vmatprep.subr.mxu0 0.0
    %1659 = vmatpush1.msra.mxu0 0.0
    %1660 = vmatprep.subr.mxu0 0.0
    %1661 = vmatpush1.msra.mxu0 0.0
    %1662 = vmatprep.subr.mxu0 0.0
    %1663 = vmatpush1.msra.mxu0 0.0
    %1664 = vmatprep.subr.mxu0 0.0
    %1665 = vmatpush1.msra.mxu0 0.0
    %1666 = vmatprep.subr.mxu0 0.0
    %1667 = vmatpush1.msra.mxu0 0.0
    %1668 = vmatprep.subr.mxu0 0.0
    %1669 = vmatpush1.msra.mxu0 0.0
    %1670 = vmatprep.subr.mxu0 0.0
    %1671 = vmatpush1.msra.mxu0 0.0
    %1672 = vmatprep.subr.mxu0 0.0
    %1673 = vmatpush1.msra.mxu0 0.0
    %1674 = vmatprep.subr.mxu0 0.0
    %1675 = vmatpush1.msra.mxu0 0.0
    %1676 = vmatprep.subr.mxu0 0.0
    %1677 = vmatpush1.msra.mxu0 0.0
    %1678 = vmatprep.subr.mxu0 0.0
    %1679 = vmatpush1.msra.mxu0 0.0
    %1680 = vmatprep.subr.mxu0 0.0
    %1681 = vmatpush1.msra.mxu0 0.0
    %1682 = vmatprep.subr.mxu0 0.0
    %1683 = vmatpush1.msra.mxu0 0.0
    %1684 = vmatprep.subr.mxu0 0.0
    %1685 = vmatpush1.msra.mxu0 0.0
    %1686 = vmatprep.subr.mxu0 0.0
    %1687 = vmatpush1.msra.mxu0 0.0
    %1688 = vmatprep.subr.mxu0 0.0
    %1689 = vmatpush1.msra.mxu0 0.0
    %1690 = vmatprep.subr.mxu0 0.0
    %1691 = vmatpush1.msra.mxu0 0.0
    %1692 = vmatprep.subr.mxu0 0.0
    %1693 = vmatpush1.msra.mxu0 0.0
    %1694 = vmatprep.subr.mxu0 0.0
    %1695 = vmatpush1.msra.mxu0 0.0
    %1696 = vmatprep.subr.mxu0 0.0
    %1697 = vmatpush1.msra.mxu0 0.0
    %1698 = vmatprep.subr.mxu0 0.0
    %1699 = vmatpush1.msra.mxu0 0.0
    %1700 = vmatprep.mubr.f32.mxu0 0.0
    %v1701 = vand.u32 %v1472, 4294901760
    %v1702 = vsub.f32 %v1472, %v1701
    %1703 = vmatmul.mubr.f32.gmra.mrb[0].mxu0 %v1702
    %v1704 = vpop.f32.mrb[0].mxu0
    %v1705 = vadd.f32 %v1629, %v1704
    %v1706 = vpop.f32.mrb[0].mxu0
    %1707 = vdwg.mxu0
    %1708 = vmatprep.subr.mxu0 0.0
    %v1709 = vand.u32 %v38, 4294901760
    %1710 = vmatpush1.msra.mxu0 %v1709
    %1711 = vmatprep.subr.mxu0 0.0
    %v1712 = vand.u32 %v39, 4294901760
    %1713 = vmatpush1.msra.mxu0 %v1712
    %1714 = vmatprep.subr.mxu0 0.0
    %1715 = vmatpush1.msra.mxu0 0.0
    %1716 = vmatprep.subr.mxu0 0.0
    %1717 = vmatpush1.msra.mxu0 0.0
    %1718 = vmatprep.subr.mxu0 0.0
    %1719 = vmatpush1.msra.mxu0 0.0
    %1720 = vmatprep.subr.mxu0 0.0
    %1721 = vmatpush1.msra.mxu0 0.0
    %1722 = vmatprep.subr.mxu0 0.0
    %1723 = vmatpush1.msra.mxu0 0.0
    %1724 = vmatprep.subr.mxu0 0.0
    %1725 = vmatpush1.msra.mxu0 0.0
    %1726 = vmatprep.subr.mxu0 0.0
    %1727 = vmatpush1.msra.mxu0 0.0
    %1728 = vmatprep.subr.mxu0 0.0
    %1729 = vmatpush1.msra.mxu0 0.0
    %1730 = vmatprep.subr.mxu0 0.0
    %1731 = vmatpush1.msra.mxu0 0.0
    %1732 = vmatprep.subr.mxu0 0.0
    %1733 = vmatpush1.msra.mxu0 0.0
    %1734 = vmatprep.subr.mxu0 0.0
    %1735 = vmatpush1.msra.mxu0 0.0
    %1736 = vmatprep.subr.mxu0 0.0
    %1737 = vmatpush1.msra.mxu0 0.0
    %1738 = vmatprep.subr.mxu0 0.0
    %1739 = vmatpush1.msra.mxu0 0.0
    %1740 = vmatprep.subr.mxu0 0.0
    %1741 = vmatpush1.msra.mxu0 0.0
    %1742 = vmatprep.subr.mxu0 0.0
    %1743 = vmatpush1.msra.mxu0 0.0
    %1744 = vmatprep.subr.mxu0 0.0
    %1745 = vmatpush1.msra.mxu0 0.0
    %1746 = vmatprep.subr.mxu0 0.0
    %1747 = vmatpush1.msra.mxu0 0.0
    %1748 = vmatprep.subr.mxu0 0.0
    %1749 = vmatpush1.msra.mxu0 0.0
    %1750 = vmatprep.subr.mxu0 0.0
    %1751 = vmatpush1.msra.mxu0 0.0
    %1752 = vmatprep.subr.mxu0 0.0
    %1753 = vmatpush1.msra.mxu0 0.0
    %1754 = vmatprep.subr.mxu0 0.0
    %1755 = vmatpush1.msra.mxu0 0.0
    %1756 = vmatprep.subr.mxu0 0.0
    %1757 = vmatpush1.msra.mxu0 0.0
    %1758 = vmatprep.subr.mxu0 0.0
    %1759 = vmatpush1.msra.mxu0 0.0
    %1760 = vmatprep.subr.mxu0 0.0
    %1761 = vmatpush1.msra.mxu0 0.0
    %1762 = vmatprep.subr.mxu0 0.0
    %1763 = vmatpush1.msra.mxu0 0.0
    %1764 = vmatprep.subr.mxu0 0.0
    %1765 = vmatpush1.msra.mxu0 0.0
    %1766 = vmatprep.subr.mxu0 0.0
    %1767 = vmatpush1.msra.mxu0 0.0
    %1768 = vmatprep.subr.mxu0 0.0
    %1769 = vmatpush1.msra.mxu0 0.0
    %1770 = vmatprep.subr.mxu0 0.0
    %1771 = vmatpush1.msra.mxu0 0.0
    %1772 = vmatprep.subr.mxu0 0.0
    %1773 = vmatpush1.msra.mxu0 0.0
    %1774 = vmatprep.mubr.f32.mxu0 0.0
    %v1775 = vand.u32 %v1472, 4294901760
    %v1776 = vsub.f32 %v1472, %v1775
    %v1777 = vand.u32 %v1776, 4294901760
    %1778 = vmatmul.mubr.f32.gmra.mrb[0].mxu0 %v1777
    %v1779 = vpop.f32.mrb[0].mxu0
    %v1780 = vadd.f32 %v1705, %v1779
    %v1781 = vpop.f32.mrb[0].mxu0
    %1782 = vdwg.mxu0
    %1783 = vmatprep.subr.mxu0 0.0
    %v1784 = vand.u32 %v38, 4294901760
    %v1785 = vsub.f32 %v38, %v1784
    %v1786 = vand.u32 %v1785, 4294901760
    %1787 = vmatpush1.msra.mxu0 %v1786
    %1788 = vmatprep.subr.mxu0 0.0
    %v1789 = vand.u32 %v39, 4294901760
    %v1790 = vsub.f32 %v39, %v1789
    %v1791 = vand.u32 %v1790, 4294901760
    %1792 = vmatpush1.msra.mxu0 %v1791
    %1793 = vmatprep.subr.mxu0 0.0
    %1794 = vmatpush1.msra.mxu0 0.0
    %1795 = vmatprep.subr.mxu0 0.0
    %1796 = vmatpush1.msra.mxu0 0.0
    %1797 = vmatprep.subr.mxu0 0.0
    %1798 = vmatpush1.msra.mxu0 0.0
    %1799 = vmatprep.subr.mxu0 0.0
    %1800 = vmatpush1.msra.mxu0 0.0
    %1801 = vmatprep.subr.mxu0 0.0
    %1802 = vmatpush1.msra.mxu0 0.0
    %1803 = vmatprep.subr.mxu0 0.0
    %1804 = vmatpush1.msra.mxu0 0.0
    %1805 = vmatprep.subr.mxu0 0.0
    %1806 = vmatpush1.msra.mxu0 0.0
    %1807 = vmatprep.subr.mxu0 0.0
    %1808 = vmatpush1.msra.mxu0 0.0
    %1809 = vmatprep.subr.mxu0 0.0
    %1810 = vmatpush1.msra.mxu0 0.0
    %1811 = vmatprep.subr.mxu0 0.0
    %1812 = vmatpush1.msra.mxu0 0.0
    %1813 = vmatprep.subr.mxu0 0.0
    %1814 = vmatpush1.msra.mxu0 0.0
    %1815 = vmatprep.subr.mxu0 0.0
    %1816 = vmatpush1.msra.mxu0 0.0
    %1817 = vmatprep.subr.mxu0 0.0
    %1818 = vmatpush1.msra.mxu0 0.0
    %1819 = vmatprep.subr.mxu0 0.0
    %1820 = vmatpush1.msra.mxu0 0.0
    %1821 = vmatprep.subr.mxu0 0.0
    %1822 = vmatpush1.msra.mxu0 0.0
    %1823 = vmatprep.subr.mxu0 0.0
    %1824 = vmatpush1.msra.mxu0 0.0
    %1825 = vmatprep.subr.mxu0 0.0
    %1826 = vmatpush1.msra.mxu0 0.0
    %1827 = vmatprep.subr.mxu0 0.0
    %1828 = vmatpush1.msra.mxu0 0.0
    %1829 = vmatprep.subr.mxu0 0.0
    %1830 = vmatpush1.msra.mxu0 0.0
    %1831 = vmatprep.subr.mxu0 0.0
    %1832 = vmatpush1.msra.mxu0 0.0
    %1833 = vmatprep.subr.mxu0 0.0
    %1834 = vmatpush1.msra.mxu0 0.0
    %1835 = vmatprep.subr.mxu0 0.0
    %1836 = vmatpush1.msra.mxu0 0.0
    %1837 = vmatprep.subr.mxu0 0.0
    %1838 = vmatpush1.msra.mxu0 0.0
    %1839 = vmatprep.subr.mxu0 0.0
    %1840 = vmatpush1.msra.mxu0 0.0
    %1841 = vmatprep.subr.mxu0 0.0
    %1842 = vmatpush1.msra.mxu0 0.0
    %1843 = vmatprep.subr.mxu0 0.0
    %1844 = vmatpush1.msra.mxu0 0.0
    %1845 = vmatprep.subr.mxu0 0.0
    %1846 = vmatpush1.msra.mxu0 0.0
    %1847 = vmatprep.subr.mxu0 0.0
    %1848 = vmatpush1.msra.mxu0 0.0
    %1849 = vmatprep.subr.mxu0 0.0
    %1850 = vmatpush1.msra.mxu0 0.0
    %1851 = vmatprep.subr.mxu0 0.0
    %1852 = vmatpush1.msra.mxu0 0.0
    %1853 = vmatprep.mubr.f32.mxu0 0.0
    %v1854 = vand.u32 %v1472, 4294901760
    %1855 = vmatmul.mubr.f32.gmra.mrb[0].mxu0 %v1854
    %v1856 = vpop.f32.mrb[0].mxu0
    %v1857 = vadd.f32 %v1780, %v1856
    %v1858 = vpop.f32.mrb[0].mxu0
    %1859 = vdwg.mxu0
    %1860 = vmatprep.subr.mxu0 0.0
    %v1861 = vand.u32 %v38, 4294901760
    %1862 = vmatpush1.msra.mxu0 %v1861
    %1863 = vmatprep.subr.mxu0 0.0
    %v1864 = vand.u32 %v39, 4294901760
    %1865 = vmatpush1.msra.mxu0 %v1864
    %1866 = vmatprep.subr.mxu0 0.0
    %1867 = vmatpush1.msra.mxu0 0.0
    %1868 = vmatprep.subr.mxu0 0.0
    %1869 = vmatpush1.msra.mxu0 0.0
    %1870 = vmatprep.subr.mxu0 0.0
    %1871 = vmatpush1.msra.mxu0 0.0
    %1872 = vmatprep.subr.mxu0 0.0
    %1873 = vmatpush1.msra.mxu0 0.0
    %1874 = vmatprep.subr.mxu0 0.0
    %1875 = vmatpush1.msra.mxu0 0.0
    %1876 = vmatprep.subr.mxu0 0.0
    %1877 = vmatpush1.msra.mxu0 0.0
    %1878 = vmatprep.subr.mxu0 0.0
    %1879 = vmatpush1.msra.mxu0 0.0
    %1880 = vmatprep.subr.mxu0 0.0
    %1881 = vmatpush1.msra.mxu0 0.0
    %1882 = vmatprep.subr.mxu0 0.0
    %1883 = vmatpush1.msra.mxu0 0.0
    %1884 = vmatprep.subr.mxu0 0.0
    %1885 = vmatpush1.msra.mxu0 0.0
    %1886 = vmatprep.subr.mxu0 0.0
    %1887 = vmatpush1.msra.mxu0 0.0
    %1888 = vmatprep.subr.mxu0 0.0
    %1889 = vmatpush1.msra.mxu0 0.0
    %1890 = vmatprep.subr.mxu0 0.0
    %1891 = vmatpush1.msra.mxu0 0.0
    %1892 = vmatprep.subr.mxu0 0.0
    %1893 = vmatpush1.msra.mxu0 0.0
    %1894 = vmatprep.subr.mxu0 0.0
    %1895 = vmatpush1.msra.mxu0 0.0
    %1896 = vmatprep.subr.mxu0 0.0
    %1897 = vmatpush1.msra.mxu0 0.0
    %1898 = vmatprep.subr.mxu0 0.0
    %1899 = vmatpush1.msra.mxu0 0.0
    %1900 = vmatprep.subr.mxu0 0.0
    %1901 = vmatpush1.msra.mxu0 0.0
    %1902 = vmatprep.subr.mxu0 0.0
    %1903 = vmatpush1.msra.mxu0 0.0
    %1904 = vmatprep.subr.mxu0 0.0
    %1905 = vmatpush1.msra.mxu0 0.0
    %1906 = vmatprep.subr.mxu0 0.0
    %1907 = vmatpush1.msra.mxu0 0.0
    %1908 = vmatprep.subr.mxu0 0.0
    %1909 = vmatpush1.msra.mxu0 0.0
    %1910 = vmatprep.subr.mxu0 0.0
    %1911 = vmatpush1.msra.mxu0 0.0
    %1912 = vmatprep.subr.mxu0 0.0
    %1913 = vmatpush1.msra.mxu0 0.0
    %1914 = vmatprep.subr.mxu0 0.0
    %1915 = vmatpush1.msra.mxu0 0.0
    %1916 = vmatprep.subr.mxu0 0.0
    %1917 = vmatpush1.msra.mxu0 0.0
    %1918 = vmatprep.subr.mxu0 0.0
    %1919 = vmatpush1.msra.mxu0 0.0
    %1920 = vmatprep.subr.mxu0 0.0
    %1921 = vmatpush1.msra.mxu0 0.0
    %1922 = vmatprep.subr.mxu0 0.0
    %1923 = vmatpush1.msra.mxu0 0.0
    %1924 = vmatprep.subr.mxu0 0.0
    %1925 = vmatpush1.msra.mxu0 0.0
    %1926 = vmatprep.mubr.f32.mxu0 0.0
    %v1927 = vand.u32 %v1472, 4294901760
    %1928 = vmatmul.mubr.f32.gmra.mrb[0].mxu0 %v1927
    %v1929 = vpop.f32.mrb[0].mxu0
    %v1930 = vadd.f32 %v1857, %v1929
    %v1931 = vpop.f32.mrb[0].mxu0
    %1932 = vdwg.mxu0
    %1934 = vrot.lane.b32.xlu0 %v1930, 96
    %v1935 = vpop.permute.xlu0 %1934
    %vm1937 = vcmask 1044224
    %1938 = vst.msk [vmem:[#allocation7] sm:$0xf] %vm1937, %v1935
    // Predicated region
    $region18: #{tpu_custom_call.1} parent=1 // pred_check
      _
    $region19: #{tpu_custom_call.1} parent=1 // pred_check_branch
      %1940 = sbr.rel (0) target = $region21
    $region20: #{tpu_custom_call.1} parent=1 // pred_region
      %s1942 = ssub.s32 64, 64
      %1943 = vsyncadd [#allocation4], %s1942
      %s1945 = sshll.u32 [#allocation7], 4
      %s1946 = int_to_ptr.vmem [resolvable:$true] %s1945
      %1948 = dma.vmem_to_hbm [thread:$0]  %s1946, 64, %s2, [#allocation4]
    $region21: #{tpu_custom_call.1} parent=1 // pred_fallthru
      _
    // Predicated region
    $region22: #{tpu_custom_call.1} parent=1 // pred_check
      _
    $region23: #{tpu_custom_call.1} parent=1 // pred_check_branch
      %1950 = sbr.rel (0) target = $region25
    $region24: #{tpu_custom_call.1} parent=1 // pred_region
      %1951 = dma.done [#allocation4], 64
    $region25: #{tpu_custom_call.1} parent=1 // pred_fallthru
      _
    %1952 = vsyncpa [#allocation3], 1
    %1953 = vsyncpa [#allocation6], 1
    %1954 = vsyncpa [#allocation4], 1

</llo_original>
